<compile_context>
chip_gen: v7x
topology: tpu7x:2x2x1
jax: 0.10.0
libtpu: 0.0.40
codegen_flags: <defaults>
</compile_context>

<pallas_src>
import numpy as np
import jax
import jax.numpy as jnp
from jax.experimental import pallas as pl
from jax.experimental.pallas import tpu as pltpu


def _round_up(x, m):
    return ((x + m - 1) // m) * m


def _pick_tile(T, requested):
    """Largest multiple-of-8 tile <= requested that divides T (prefer >=2 tiles).

    Returns (tile_t, needs_pad)."""
    requested = max(8, (requested // 8) * 8)
    if T % 8 != 0:
        return min(requested, _round_up(T, 8)), True
    # keep >= 2 grid tiles when T allows, so both v7x TensorCores get work
    cap = min(requested, max(8, ((T // 2) // 8) * 8)) if T >= 16 else 8
    t = cap
    while t >= 8:
        if T % t == 0:
            return t, False
        t -= 8
    return 8, False  # unreachable: 8 | T


def _event_reasoning_kernel(idx_ref, text_ref, table_wt_ref, wx_ref, b_ref,
                            out_ref):
    # indices = token2nodepos[:, k] + self.the_two
    idx = idx_ref[...] + 2                                    # (tile_t, K) int32
    tile_t, k_max = idx.shape
    n_table = table_wt_ref.shape[0]

    # sum_k index_select(table, idx_k) @ Wt  ==  (sum_k onehot(idx_k)) @ (table@Wt)
    col_ids = jax.lax.broadcasted_iota(jnp.int32, (tile_t, n_table), 1)
    counts = jnp.zeros((tile_t, n_table), jnp.float32)
    for k in range(k_max):                                    # K is small & static
        counts = counts + (idx[:, k:k + 1] == col_ids).astype(jnp.float32)

    # Fused fc1 / fc3 (dropout = identity in eval):
    #   out[:, :G]    = graph_text_embed = fc1(cat([tmp, text], -1))
    #   out[:, G:G+H] = logits           = fc3(cat([text, tmp], -1))
    out = (jnp.dot(counts, table_wt_ref[...],
                   preferred_element_type=jnp.float32)
           + jnp.dot(text_ref[...], wx_ref[...],
                     preferred_element_type=jnp.float32)
           + b_ref[...])
    out_ref[...] = out.astype(out_ref.dtype)                  # narrow store only


def event_reasoning_forward(text_embeddings, token2nodepos, graph_embeddings,
                            params, *, tile_t=1024, out_dtype=jnp.bfloat16):
    B, S, H = text_embeddings.shape
    T = B * S
    K = token2nodepos.shape[-1]
    G = params["extra_emb"].shape[1]

    # graph_embeddings_with_padding_embeddings (rows 0/1 come from extra_emb)
    table = jnp.concatenate(
        [params["extra_emb"], graph_embeddings], axis=0).astype(jnp.float32)
    n_table = table.shape[0]
    n_table_p = _round_up(n_table, 8)
    table = jnp.pad(table, ((0, n_table_p - n_table), (0, 0)))

    # Split torch (out, in) weights by concat segment, transpose, and fuse
    # fc1 + fc3 into a single lane-dense (., n_out) projection + one bias row.
    w1, b1 = params["fc1_w"], params["fc1_b"]        # (G, G+H), (G,)
    w3, b3 = params["fc3_w"], params["fc3_b"]        # (H, H+G), (H,)
    n_out = _round_up(G + H, 128)                    # minimum lane-dense width
    wt = jnp.zeros((G, n_out), jnp.float32)          # graph (tmp) path
    wt = wt.at[:, :G].set(w1[:, :G].T).at[:, G:G + H].set(w3[:, H:].T)
    wx = jnp.zeros((H, n_out), jnp.float32)          # text path (kept f32: tiny)
    wx = wx.at[:, :G].set(w1[:, G:].T).at[:, G:G + H].set(w3[:, :H].T)
    bias = jnp.zeros((1, n_out), jnp.float32)
    bias = bias.at[0, :G].set(b1).at[0, G:G + H].set(b3)

    # Fold the tiny node table into the fused weight (free in XLA):
    # (counts @ table) @ wt == counts @ (table @ wt)
    table_wt = jnp.dot(table, wt)                    # (n_table_p, n_out) f32

    # Token-major layout; no dtype cast / full-array copy of the big operand.
    text_flat = text_embeddings.reshape(T, H)
    idx = token2nodepos.reshape(T, K).astype(jnp.int32)

    tile_t, needs_pad = _pick_tile(T, tile_t)
    if needs_pad:
        n_tiles = pl.cdiv(T, tile_t)
        T_pad = n_tiles * tile_t
        text_in = jnp.pad(text_flat, ((0, T_pad - T), (0, 0)))
        idx_in = jnp.pad(idx, ((0, T_pad - T), (0, 0)), constant_values=-2)
    else:
        T_pad, n_tiles = T, T // tile_t
        text_in, idx_in = text_flat, idx

    out_isize = np.dtype(out_dtype).itemsize
    cost = pl.CostEstimate(
        flops=2 * T_pad * (n_table_p + H) * n_out,
        transcendentals=0,
        bytes_accessed=(text_in.size * text_in.dtype.itemsize
                        + idx_in.size * 4
                        + T_pad * n_out * out_isize
                        + (table_wt.size + wx.size + bias.size) * 4))

    out = pl.pallas_call(
        _event_reasoning_kernel,
        out_shape=jax.ShapeDtypeStruct((T_pad, n_out), out_dtype),
        grid=(n_tiles,),
        in_specs=[
            pl.BlockSpec((tile_t, K), lambda i: (i, 0)),        # token2nodepos
            pl.BlockSpec((tile_t, H), lambda i: (i, 0)),        # text (f32 stream)
            pl.BlockSpec((n_table_p, n_out), lambda i: (0, 0)), # table @ Wt (f32)
            pl.BlockSpec((H, n_out), lambda i: (0, 0)),         # fused W, text path
            pl.BlockSpec((1, n_out), lambda i: (0, 0)),         # fused bias row
        ],
        out_specs=pl.BlockSpec((tile_t, n_out), lambda i: (i, 0)),
        compiler_params=pltpu.CompilerParams(
            dimension_semantics=("parallel",)),
        cost_estimate=cost,
    )(idx_in, text_in, table_wt, wx, bias)

    # NOTE: downstream consumers that can read the fused (T, n_out) buffer
    # directly should do so to avoid re-materializing these lane slices.
    gte = out[:T, :G]                                   # graph_text_embed (fc1)
    logits = out[:T, G:G + H].reshape(B, S, H)          # fc3 output
    return logits, gte


def _reference_forward(text_embeddings, token2nodepos, graph_embeddings, params):
    """Plain-JAX f32 transliteration of the PyTorch forward (components=['wm'])."""
    B, S, H = text_embeddings.shape
    T = B * S
    table = jnp.concatenate([params["extra_emb"], graph_embeddings], axis=0)
    idx = token2nodepos.reshape(T, -1) + 2
    tmp = jnp.zeros((T, table.shape[1]), jnp.float32)
    for i in range(token2nodepos.shape[-1]):
        tmp = tmp + table[idx[:, i]]
    text_flat = text_embeddings.reshape(T, H)
    gte = jnp.concatenate([tmp, text_flat], -1) @ params["fc1_w"].T + params["fc1_b"]
    logits = (jnp.concatenate([text_flat, tmp], -1) @ params["fc3_w"].T
              + params["fc3_b"])
    return logits.reshape(B, S, H), gte


if __name__ == "__main__":
    # small shapes consistent with the module; T=512 -> tile 256, 2-step grid
    B, S, K = 4, 128, 3          # batch, seq len, max concepts per token
    G, H = 32, 64                # g_dim, plm_hidden_dim
    N_NODES = 10                 # nodes produced by the wm GNN for this batch
    INIT_RANGE = 0.02

    key = jax.random.PRNGKey(0)
    k_txt, k_g, k_idx, k_emb, k_w1, k_w3 = jax.random.split(key, 6)

    text = jax.random.normal(k_txt, (B, S, H), jnp.float32)
    graph_emb = jax.random.normal(k_g, (N_NODES, G), jnp.float32)
    # token2nodepos values in [-2, N_NODES-1]; +2 indexes the padded table
    token2nodepos = jax.random.randint(k_idx, (B * S, K), -2, N_NODES, jnp.int32)

    params = {
        # nn.Embedding(2, g_dim, padding_idx=0); _init_weights2 re-inits normal
        "extra_emb": INIT_RANGE * jax.random.normal(k_emb, (2, G), jnp.float32),
        "fc1_w": INIT_RANGE * jax.random.normal(k_w1, (G, G + H), jnp.float32),
        "fc1_b": jnp.zeros((G,), jnp.float32),
        "fc3_w": INIT_RANGE * jax.random.normal(k_w3, (H, H + G), jnp.float32),
        "fc3_b": jnp.zeros((H,), jnp.float32),
    }

    logits, gte = event_reasoning_forward(text, token2nodepos, graph_emb, params)
    jax.block_until_ready(logits)
    jax.block_until_ready(gte)

    ref_logits, ref_gte = _reference_forward(text, token2nodepos, graph_emb, params)
    assert logits.shape == (B, S, H)
    assert gte.shape == (B * S, G)
    # bf16 output store vs f32 reference: allow bf16-rounding-level differences
    assert jnp.allclose(logits.astype(jnp.float32), ref_logits, atol=2e-2, rtol=2e-2)
    assert jnp.allclose(gte.astype(jnp.float32), ref_gte, atol=2e-2, rtol=2e-2)
    print("KERNEL_OK")
</pallas_src>

<mosaic_0001>
module attributes {stable_mosaic.version = 11 : i64} {
  func.func @_event_reasoning_kernel(%arg0: i32, %arg1: memref<256x3xi32, #tpu.memory_space<vmem>>, %arg2: memref<256x64xf32, #tpu.memory_space<vmem>>, %arg3: memref<16x128xf32, #tpu.memory_space<vmem>>, %arg4: memref<64x128xf32, #tpu.memory_space<vmem>>, %arg5: memref<1x128xf32, #tpu.memory_space<vmem>>, %arg6: memref<256x128xbf16, #tpu.memory_space<vmem>>) attributes {dimension_semantics = [#tpu.dimension_semantics<parallel>], iteration_bounds = array<i64: 2>, scalar_prefetch = 0 : i64, scratch_operands = 0 : i64, tpu.core_type = #tpu.core_type<tc>, window_params = [{transform_indices = @transform_0, window_bounds = array<i64: 256, 3>}, {transform_indices = @transform_1, window_bounds = array<i64: 256, 64>}, {pipeline_mode = #tpu.pipeline_mode<synchronous>, transform_indices = @transform_2, window_bounds = array<i64: 16, 128>}, {pipeline_mode = #tpu.pipeline_mode<synchronous>, transform_indices = @transform_3, window_bounds = array<i64: 64, 128>}, {pipeline_mode = #tpu.pipeline_mode<synchronous>, transform_indices = @transform_4, window_bounds = array<i64: 1, 128>}, {transform_indices = @transform_5, window_bounds = array<i64: 256, 128>}]} {
    %c0 = arith.constant 0 : index
    %c0_0 = arith.constant 0 : index
    %0 = vector.load %arg1[%c0, %c0_0] : memref<256x3xi32, #tpu.memory_space<vmem>>, vector<256x3xi32>
    %c2_i32 = arith.constant 2 : i32
    %1 = vector.broadcast %c2_i32 : i32 to vector<256x3xi32>
    %2 = arith.addi %0, %1 : vector<256x3xi32>
    %3 = tpu.iota {dimensions = array<i32: 1>} : vector<256x16xi32>
    %cst = arith.constant 0.000000e+00 : f32
    %4 = vector.broadcast %cst : f32 to vector<256x16xf32>
    %5 = vector.extract_strided_slice %2 {offsets = [0, 0], sizes = [256, 1], strides = [1, 1]} : vector<256x3xi32> to vector<256x1xi32>
    %6 = vector.broadcast %5 : vector<256x1xi32> to vector<256x16xi32>
    %7 = arith.cmpi eq, %6, %3 : vector<256x16xi32>
    %8 = arith.extui %7 : vector<256x16xi1> to vector<256x16xi32>
    %9 = arith.sitofp %8 : vector<256x16xi32> to vector<256x16xf32>
    %10 = arith.addf %4, %9 : vector<256x16xf32>
    %11 = vector.extract_strided_slice %2 {offsets = [0, 1], sizes = [256, 1], strides = [1, 1]} : vector<256x3xi32> to vector<256x1xi32>
    %12 = vector.broadcast %11 : vector<256x1xi32> to vector<256x16xi32>
    %13 = arith.cmpi eq, %12, %3 : vector<256x16xi32>
    %14 = arith.extui %13 : vector<256x16xi1> to vector<256x16xi32>
    %15 = arith.sitofp %14 : vector<256x16xi32> to vector<256x16xf32>
    %16 = arith.addf %10, %15 : vector<256x16xf32>
    %17 = vector.extract_strided_slice %2 {offsets = [0, 2], sizes = [256, 1], strides = [1, 1]} : vector<256x3xi32> to vector<256x1xi32>
    %18 = vector.broadcast %17 : vector<256x1xi32> to vector<256x16xi32>
    %19 = arith.cmpi eq, %18, %3 : vector<256x16xi32>
    %20 = arith.extui %19 : vector<256x16xi1> to vector<256x16xi32>
    %21 = arith.sitofp %20 : vector<256x16xi32> to vector<256x16xf32>
    %22 = arith.addf %16, %21 : vector<256x16xf32>
    %c0_1 = arith.constant 0 : index
    %c0_2 = arith.constant 0 : index
    %23 = vector.load %arg3[%c0_1, %c0_2] : memref<16x128xf32, #tpu.memory_space<vmem>>, vector<16x128xf32>
    %cst_3 = arith.constant dense<0.000000e+00> : vector<256x128xf32>
    %24 = tpu.matmul %22, %23, %cst_3 {dimension_numbers = #tpu.dot_dimension_numbers<[1], [0], [0], [1], [0, 0, 1, 1], [], []>} : vector<256x16xf32>, vector<16x128xf32>, vector<256x128xf32> -> vector<256x128xf32>
    %c0_4 = arith.constant 0 : index
    %c0_5 = arith.constant 0 : index
    %25 = vector.load %arg2[%c0_4, %c0_5] : memref<256x64xf32, #tpu.memory_space<vmem>>, vector<256x64xf32>
    %c0_6 = arith.constant 0 : index
    %c0_7 = arith.constant 0 : index
    %26 = vector.load %arg4[%c0_6, %c0_7] : memref<64x128xf32, #tpu.memory_space<vmem>>, vector<64x128xf32>
    %cst_8 = arith.constant dense<0.000000e+00> : vector<256x128xf32>
    %27 = tpu.matmul %25, %26, %cst_8 {dimension_numbers = #tpu.dot_dimension_numbers<[1], [0], [0], [1], [0, 0, 1, 1], [], []>} : vector<256x64xf32>, vector<64x128xf32>, vector<256x128xf32> -> vector<256x128xf32>
    %28 = arith.addf %24, %27 : vector<256x128xf32>
    %c0_9 = arith.constant 0 : index
    %c0_10 = arith.constant 0 : index
    %29 = vector.load %arg5[%c0_9, %c0_10] : memref<1x128xf32, #tpu.memory_space<vmem>>, vector<1x128xf32>
    %30 = vector.broadcast %29 : vector<1x128xf32> to vector<256x128xf32>
    %31 = arith.addf %28, %30 : vector<256x128xf32>
    %32 = arith.truncf %31 : vector<256x128xf32> to vector<256x128xbf16>
    %c0_11 = arith.constant 0 : index
    %c0_12 = arith.constant 0 : index
    %33 = vector.load %arg6[%c0_11, %c0_12] : memref<256x128xbf16, #tpu.memory_space<vmem>>, vector<256x128xbf16>
    tpu.vector_store %arg6[%c0_11, %c0_12], %32 {strides = array<i32>} : memref<256x128xbf16, #tpu.memory_space<vmem>>, vector<256x128xbf16>,
    return
  }
  func.func @transform_0(%arg0: i32) -> (i32, i32) {
    %c0_i32 = arith.constant 0 : i32
    %c0_i32_0 = arith.constant 0 : i32
    return %arg0, %c0_i32 : i32, i32
  }
  func.func @transform_1(%arg0: i32) -> (i32, i32) {
    %c0_i32 = arith.constant 0 : i32
    %c0_i32_0 = arith.constant 0 : i32
    return %arg0, %c0_i32 : i32, i32
  }
  func.func @transform_2(%arg0: i32) -> (i32, i32) {
    %c0_i32 = arith.constant 0 : i32
    %c0_i32_0 = arith.constant 0 : i32
    %c0_i32_1 = arith.constant 0 : i32
    return %c0_i32, %c0_i32_0 : i32, i32
  }
  func.func @transform_3(%arg0: i32) -> (i32, i32) {
    %c0_i32 = arith.constant 0 : i32
    %c0_i32_0 = arith.constant 0 : i32
    %c0_i32_1 = arith.constant 0 : i32
    return %c0_i32, %c0_i32_0 : i32, i32
  }
  func.func @transform_4(%arg0: i32) -> (i32, i32) {
    %c0_i32 = arith.constant 0 : i32
    %c0_i32_0 = arith.constant 0 : i32
    %c0_i32_1 = arith.constant 0 : i32
    return %c0_i32, %c0_i32_0 : i32, i32
  }
  func.func @transform_5(%arg0: i32) -> (i32, i32) {
    %c0_i32 = arith.constant 0 : i32
    %c0_i32_0 = arith.constant 0 : i32
    return %arg0, %c0_i32 : i32, i32
  }
}

</mosaic_0001>

<llo_original>
// kernel: tpu_custom_call.1
$region0: #{tpu_custom_call.1}
  #allocation0 [shape = 'u32[]', space=smem, size = 0x4, offset = 0x4, fixed_abs, tag = 'smem constant byte address 0x4 - core index']
  #allocation1 [shape = 'u32[144,128]{1,0:T(1,128)}', space=vmem, size = 0x12000, scoped, tag = 'internal scratch']
  %s0 = inlined_call_operand.vmem [shape: s32[512,3], index: 0, kind: input, shape index: {}]
  %s1 = inlined_call_operand.vmem [shape: f32[512,64], index: 1, kind: input, shape index: {}]
  %s2 = inlined_call_operand.vmem [shape: f32[16,128], index: 2, kind: input, shape index: {}]
  %s3 = inlined_call_operand.vmem [shape: f32[64,128], index: 3, kind: input, shape index: {}]
  %s4 = inlined_call_operand.vmem [shape: f32[1,128], index: 4, kind: input, shape index: {}]
  %s5 = inlined_call_operand.hbm [shape: bf16[512,128], index: 5, kind: output, shape index: {}]
  %s6 = sld [smem:[#allocation0]]
  $region53: #{tpu_custom_call.1} parent=0
    _
  %s8 = ssub.s32 1, %s6
  %s9 = scalar_select 0, %s8, %s6
  $region1: #{tpu_custom_call.1} parent=0
    #allocation2 [shape = 'u8[131072]{0}', space=vmem, size = 0x20000, scoped, tag = 'output window, operand 0']
    #allocation3 [shape = 's32[2]{0}', space=sflag, size = 0x8, scoped, tag = 'scoped memory for tpu_custom_call.1']
    %10 = vsyncpa [#allocation3], 0
    %s11 = scalar_lea.sflag [#allocation3], 1
    %12 = vsyncpa %s11, 0
    loop: start=0, step=1, limit=4
    $region2: #{tpu_custom_call.1} parent=1 // loop_pre_header
      _
    $region3: #{tpu_custom_call.1} parent=1 // loop_header
      %s14 = sphi 0, %s18
      %p15 = scmp.ge.s32.totalorder %s14, 4
      %s24 = sphi 0, %s26
      %s27 = sphi 0, %s24
      %s28 = sphi 0, %s27
      %s44 = sphi 0, %s28
      %s50 = sphi 0, %s52
      %s53 = sphi 0, %s50
      %s54 = sphi 0, %s53
      %s70 = sphi 0, %s54
      %s74 = sphi 0, %s74
      %s76 = sphi 0, %s74
      %s77 = sphi 0, %s76
      %s91 = sphi 0, %s77
      %s95 = sphi 0, %s95
      %s97 = sphi 0, %s95
      %s98 = sphi 0, %s97
      %s112 = sphi 0, %s98
      %s116 = sphi 0, %s116
      %s118 = sphi 0, %s116
      %s119 = sphi 0, %s118
      %s133 = sphi 0, %s119
      %s139 = sphi 0, %s141
      %s142 = sphi 0, %s139
      %s143 = sphi 0, %s142
      %s159 = sphi 0, %s143
    $region4: #{tpu_custom_call.1} parent=1 // loop_header_branch
      %17 = sbr.rel (%p15) target = $region8
    $region5: #{tpu_custom_call.1} parent=1 // loop_body
      %s19 = ssub.s32 %s14, 1
      %s20 = ssub.s32 %s14, 2
      %s21 = sadd.s32 %s14, 1
      %s22 = ssub.s32 %s14, %s21
      %p23 = scmp.eq.s32.totalorder %s22, 0
      %s25 = sadd.s32 %s24, 1
      %s26 = scalar_select %p23, %s24, %s25
      %p29 = pneg %p23
      %p30 = scmp.eq.s32.totalorder %s14, 1
      %p31 = por %p29, %p30
      %p32 = scmp.ne.s32.totalorder %s24, %s27
      %p33 = scmp.eq.s32.totalorder %s14, 0
      %p34 = por %p32, %p33
      %p35 = scmp.ne.s32.totalorder %s24, %s27
      %p36 = scmp.eq.s32.totalorder %s19, 1
      %p37 = por %p35, %p36
      %p38 = scmp.ne.s32.totalorder %s27, %s28
      %p39 = scmp.eq.s32.totalorder %s19, 0
      %p40 = por %p38, %p39
      %p41 = scmp.ne.s32.totalorder %s27, %s28
      %p42 = scmp.eq.s32.totalorder %s20, 1
      %p43 = por %p41, %p42
      %p45 = scmp.ne.s32.totalorder %s28, %s44
      %p46 = scmp.eq.s32.totalorder %s20, 0
      %p47 = por %p45, %p46
      %s48 = ssub.s32 %s14, %s21
      %p49 = scmp.eq.s32.totalorder %s48, 0
      %s51 = sadd.s32 %s50, 1
      %s52 = scalar_select %p49, %s50, %s51
      %p55 = pneg %p49
      %p56 = scmp.eq.s32.totalorder %s14, 1
      %p57 = por %p55, %p56
      %p58 = scmp.ne.s32.totalorder %s50, %s53
      %p59 = scmp.eq.s32.totalorder %s14, 0
      %p60 = por %p58, %p59
      %p61 = scmp.ne.s32.totalorder %s50, %s53
      %p62 = scmp.eq.s32.totalorder %s19, 1
      %p63 = por %p61, %p62
      %p64 = scmp.ne.s32.totalorder %s53, %s54
      %p65 = scmp.eq.s32.totalorder %s19, 0
      %p66 = por %p64, %p65
      %p67 = scmp.ne.s32.totalorder %s53, %s54
      %p68 = scmp.eq.s32.totalorder %s20, 1
      %p69 = por %p67, %p68
      %p71 = scmp.ne.s32.totalorder %s54, %s70
      %p72 = scmp.eq.s32.totalorder %s20, 0
      %p73 = por %p71, %p72
      %s75 = sadd.s32 %s74, 1
      %p78 = scmp.eq.s32.totalorder %s14, 1
      %p79 = scmp.ne.s32.totalorder %s74, %s76
      %p80 = scmp.eq.s32.totalorder %s14, 0
      %p81 = por %p79, %p80
      %p82 = scmp.ne.s32.totalorder %s74, %s76
      %p83 = scmp.eq.s32.totalorder %s19, 1
      %p84 = por %p82, %p83
      %p85 = scmp.ne.s32.totalorder %s76, %s77
      %p86 = scmp.eq.s32.totalorder %s19, 0
      %p87 = por %p85, %p86
      %p88 = scmp.ne.s32.totalorder %s76, %s77
      %p89 = scmp.eq.s32.totalorder %s20, 1
      %p90 = por %p88, %p89
      %p92 = scmp.ne.s32.totalorder %s77, %s91
      %p93 = scmp.eq.s32.totalorder %s20, 0
      %p94 = por %p92, %p93
      %s96 = sadd.s32 %s95, 1
      %p99 = scmp.eq.s32.totalorder %s14, 1
      %p100 = scmp.ne.s32.totalorder %s95, %s97
      %p101 = scmp.eq.s32.totalorder %s14, 0
      %p102 = por %p100, %p101
      %p103 = scmp.ne.s32.totalorder %s95, %s97
      %p104 = scmp.eq.s32.totalorder %s19, 1
      %p105 = por %p103, %p104
      %p106 = scmp.ne.s32.totalorder %s97, %s98
      %p107 = scmp.eq.s32.totalorder %s19, 0
      %p108 = por %p106, %p107
      %p109 = scmp.ne.s32.totalorder %s97, %s98
      %p110 = scmp.eq.s32.totalorder %s20, 1
      %p111 = por %p109, %p110
      %p113 = scmp.ne.s32.totalorder %s98, %s112
      %p114 = scmp.eq.s32.totalorder %s20, 0
      %p115 = por %p113, %p114
      %s117 = sadd.s32 %s116, 1
      %p120 = scmp.eq.s32.totalorder %s14, 1
      %p121 = scmp.ne.s32.totalorder %s116, %s118
      %p122 = scmp.eq.s32.totalorder %s14, 0
      %p123 = por %p121, %p122
      %p124 = scmp.ne.s32.totalorder %s116, %s118
      %p125 = scmp.eq.s32.totalorder %s19, 1
      %p126 = por %p124, %p125
      %p127 = scmp.ne.s32.totalorder %s118, %s119
      %p128 = scmp.eq.s32.totalorder %s19, 0
      %p129 = por %p127, %p128
      %p130 = scmp.ne.s32.totalorder %s118, %s119
      %p131 = scmp.eq.s32.totalorder %s20, 1
      %p132 = por %p130, %p131
      %p134 = scmp.ne.s32.totalorder %s119, %s133
      %p135 = scmp.eq.s32.totalorder %s20, 0
      %p136 = por %p134, %p135
      %s137 = ssub.s32 %s14, %s21
      %p138 = scmp.eq.s32.totalorder %s137, 0
      %s140 = sadd.s32 %s139, 1
      %s141 = scalar_select %p138, %s139, %s140
      %p144 = pneg %p138
      %p145 = scmp.eq.s32.totalorder %s14, 1
      %p146 = por %p144, %p145
      %p147 = scmp.ne.s32.totalorder %s139, %s142
      %p148 = scmp.eq.s32.totalorder %s14, 0
      %p149 = por %p147, %p148
      %p150 = scmp.ne.s32.totalorder %s139, %s142
      %p151 = scmp.eq.s32.totalorder %s19, 1
      %p152 = por %p150, %p151
      %p153 = scmp.ne.s32.totalorder %s142, %s143
      %p154 = scmp.eq.s32.totalorder %s19, 0
      %p155 = por %p153, %p154
      %p156 = scmp.ne.s32.totalorder %s142, %s143
      %p157 = scmp.eq.s32.totalorder %s20, 1
      %p158 = por %p156, %p157
      %p160 = scmp.ne.s32.totalorder %s143, %s159
      %p161 = scmp.eq.s32.totalorder %s20, 0
      %p162 = por %p160, %p161
      %p163 = scmp.le.s32.totalorder 1, %s14
      %p164 = scmp.lt.s32.totalorder %s14, 3
      %p165 = pnand %p163, %p164
      %p166 = pneg %p165
      // Predicated region
      $region9: #{tpu_custom_call.1} parent=5 // pred_check
        _
      $region10: #{tpu_custom_call.1} parent=5 // pred_check_branch
        %168 = sbr.rel (%p165) target = $region12
      $region11: #{tpu_custom_call.1} parent=5 // pred_region
        %s169 = ssub.s32 %s14, 1
        // Predicated region
        $region13: #{tpu_custom_call.1} parent=11 // pred_check
          %p170 = pneg %p87
        $region14: #{tpu_custom_call.1} parent=11 // pred_check_branch
          %172 = sbr.rel (%p170) target = $region16
        $region15: #{tpu_custom_call.1} parent=11 // pred_region
          _
        $region16: #{tpu_custom_call.1} parent=11 // pred_fallthru
          _
        // Predicated region
        $region17: #{tpu_custom_call.1} parent=11 // pred_check
          %p173 = pneg %p108
        $region18: #{tpu_custom_call.1} parent=11 // pred_check_branch
          %175 = sbr.rel (%p173) target = $region20
        $region19: #{tpu_custom_call.1} parent=11 // pred_region
          _
        $region20: #{tpu_custom_call.1} parent=11 // pred_fallthru
          _
        // Predicated region
        $region21: #{tpu_custom_call.1} parent=11 // pred_check
          %p176 = pneg %p129
        $region22: #{tpu_custom_call.1} parent=11 // pred_check_branch
          %178 = sbr.rel (%p176) target = $region24
        $region23: #{tpu_custom_call.1} parent=11 // pred_region
          _
        $region24: #{tpu_custom_call.1} parent=11 // pred_fallthru
          _
      $region12: #{tpu_custom_call.1} parent=5 // pred_fallthru
        _
      %p179 = scmp.lt.s32.totalorder %s14, 2
      // Predicated region
      $region25: #{tpu_custom_call.1} parent=5 // pred_check
        %p180 = pneg %p179
      $region26: #{tpu_custom_call.1} parent=5 // pred_check_branch
        %182 = sbr.rel (%p180) target = $region28
      $region27: #{tpu_custom_call.1} parent=5 // pred_region
        // Predicated region
        $region29: #{tpu_custom_call.1} parent=27 // pred_check
          %p183 = pneg %p34
        $region30: #{tpu_custom_call.1} parent=27 // pred_check_branch
          %185 = sbr.rel (%p183) target = $region32
        $region31: #{tpu_custom_call.1} parent=27 // pred_region
          %s186 = smul.u32 32, %s14
          %p187 = scmp.lt.s32.totalorder %s186, 63
          %s188 = scalar_select %p187, %s186, 63
          %s189 = smul.addr %s188, 8
          %s190 = scalar_lea.vmem %s0, %s189
          %s191 = smul.u32 32, %s14
        $region32: #{tpu_custom_call.1} parent=27 // pred_fallthru
          _
        // Predicated region
        $region33: #{tpu_custom_call.1} parent=27 // pred_check
          %p192 = pneg %p60
        $region34: #{tpu_custom_call.1} parent=27 // pred_check_branch
          %194 = sbr.rel (%p192) target = $region36
        $region35: #{tpu_custom_call.1} parent=27 // pred_region
          %s195 = smul.u32 32, %s14
          %p196 = scmp.lt.s32.totalorder %s195, 63
          %s197 = scalar_select %p196, %s195, 63
          %s198 = smul.addr %s197, 8
          %s199 = scalar_lea.vmem %s1, %s198
          %s200 = smul.u32 32, %s14
        $region36: #{tpu_custom_call.1} parent=27 // pred_fallthru
          _
      $region28: #{tpu_custom_call.1} parent=5 // pred_fallthru
        _
      %p201 = scmp.le.s32.totalorder 1, %s14
      %p202 = scmp.lt.s32.totalorder %s14, 3
      %p203 = pnand %p201, %p202
      %p204 = pneg %p203
      // Predicated region
      $region37: #{tpu_custom_call.1} parent=5 // pred_check
        _
      $region38: #{tpu_custom_call.1} parent=5 // pred_check_branch
        %206 = sbr.rel (%p203) target = $region40
      $region39: #{tpu_custom_call.1} parent=5 // pred_region
        %s207 = ssub.s32 %s14, 1
        %s208 = smul.u32 32, %s19
        %p209 = scmp.lt.s32.totalorder %s208, 63
        %s210 = scalar_select %p209, %s208, 63
        %s211 = smul.addr %s210, 8
        %s212 = scalar_lea.vmem %s0, %s211
        %p213 = pneg %p40
        %p214 = pneg %p37
        %s215 = smul.u32 32, %s19
        %p216 = scmp.lt.s32.totalorder %s215, 63
        %s217 = scalar_select %p216, %s215, 63
        %s218 = smul.addr %s217, 8
        %s219 = scalar_lea.vmem %s1, %s218
        %p220 = pneg %p66
        %p221 = pneg %p63
        %p222 = pneg %p87
        %p223 = pneg %p84
        %p224 = pneg %p108
        %p225 = pneg %p105
        %p226 = pneg %p129
        %p227 = pneg %p126
        %p228 = pneg %p155
        %p229 = pneg %p152
        %s230 = sand.u32 %s142, 1
        %s231 = scalar_lea.sflag [#allocation3], %s230
        %s232 = sand.u32 %s142, 1
        %s233 = smul.addr %s232, 128
        %s234 = scalar_lea.vmem [#allocation2], %s233
        %s235 = smul.u32 32, %s19
        %p236 = scmp.lt.s32.totalorder %s235, 63
        %s237 = scalar_select %p236, %s235, 63
        %s238 = smul.addr %s237, 8
        %s239 = scalar_lea.vmem %s0, %s238
        %s240 = smul.u32 32, %s19
        %s241 = smul.u32 32, %s19
        %p242 = scmp.lt.s32.totalorder %s241, 63
        %s243 = scalar_select %p242, %s241, 63
        %s244 = smul.addr %s243, 8
        %s245 = scalar_lea.vmem %s1, %s244
        %s246 = smul.u32 32, %s19
        %s247 = smul.u32 32, %s19
        %v248 = vld [vmem:[%s239] sm:$0xff]
        %v249 = vld [vmem:[%s239 + $0x8] sm:$0xff]
        %v250 = vld [vmem:[%s239 + $0x10] sm:$0xff]
        %v251 = vld [vmem:[%s239 + $0x18] sm:$0xff]
        %v252 = vld [vmem:[%s239 + $0x20] sm:$0xff]
        %v253 = vld [vmem:[%s239 + $0x28] sm:$0xff]
        %v254 = vld [vmem:[%s239 + $0x30] sm:$0xff]
        %v255 = vld [vmem:[%s239 + $0x38] sm:$0xff]
        %v256 = vld [vmem:[%s239 + $0x40] sm:$0xff]
        %v257 = vld [vmem:[%s239 + $0x48] sm:$0xff]
        %v258 = vld [vmem:[%s239 + $0x50] sm:$0xff]
        %v259 = vld [vmem:[%s239 + $0x58] sm:$0xff]
        %v260 = vld [vmem:[%s239 + $0x60] sm:$0xff]
        %v261 = vld [vmem:[%s239 + $0x68] sm:$0xff]
        %v262 = vld [vmem:[%s239 + $0x70] sm:$0xff]
        %v263 = vld [vmem:[%s239 + $0x78] sm:$0xff]
        %v264 = vld [vmem:[%s239 + $0x80] sm:$0xff]
        %v265 = vld [vmem:[%s239 + $0x88] sm:$0xff]
        %v266 = vld [vmem:[%s239 + $0x90] sm:$0xff]
        %v267 = vld [vmem:[%s239 + $0x98] sm:$0xff]
        %v268 = vld [vmem:[%s239 + $0xa0] sm:$0xff]
        %v269 = vld [vmem:[%s239 + $0xa8] sm:$0xff]
        %v270 = vld [vmem:[%s239 + $0xb0] sm:$0xff]
        %v271 = vld [vmem:[%s239 + $0xb8] sm:$0xff]
        %v272 = vld [vmem:[%s239 + $0xc0] sm:$0xff]
        %v273 = vld [vmem:[%s239 + $0xc8] sm:$0xff]
        %v274 = vld [vmem:[%s239 + $0xd0] sm:$0xff]
        %v275 = vld [vmem:[%s239 + $0xd8] sm:$0xff]
        %v276 = vld [vmem:[%s239 + $0xe0] sm:$0xff]
        %v277 = vld [vmem:[%s239 + $0xe8] sm:$0xff]
        %v278 = vld [vmem:[%s239 + $0xf0] sm:$0xff]
        %v279 = vld [vmem:[%s239 + $0xf8] sm:$0xff]
        %v280 = vadd.s32 %v248, 2
        %v281 = vadd.s32 %v249, 2
        %v282 = vadd.s32 %v250, 2
        %v283 = vadd.s32 %v251, 2
        %v284 = vadd.s32 %v252, 2
        %v285 = vadd.s32 %v253, 2
        %v286 = vadd.s32 %v254, 2
        %v287 = vadd.s32 %v255, 2
        %v288 = vadd.s32 %v256, 2
        %v289 = vadd.s32 %v257, 2
        %v290 = vadd.s32 %v258, 2
        %v291 = vadd.s32 %v259, 2
        %v292 = vadd.s32 %v260, 2
        %v293 = vadd.s32 %v261, 2
        %v294 = vadd.s32 %v262, 2
        %v295 = vadd.s32 %v263, 2
        %v296 = vadd.s32 %v264, 2
        %v297 = vadd.s32 %v265, 2
        %v298 = vadd.s32 %v266, 2
        %v299 = vadd.s32 %v267, 2
        %v300 = vadd.s32 %v268, 2
        %v301 = vadd.s32 %v269, 2
        %v302 = vadd.s32 %v270, 2
        %v303 = vadd.s32 %v271, 2
        %v304 = vadd.s32 %v272, 2
        %v305 = vadd.s32 %v273, 2
        %v306 = vadd.s32 %v274, 2
        %v307 = vadd.s32 %v275, 2
        %v308 = vadd.s32 %v276, 2
        %v309 = vadd.s32 %v277, 2
        %v310 = vadd.s32 %v278, 2
        %v311 = vadd.s32 %v279, 2
        %v312 = vlaneseq
        %v313 = vand.u32 %v312, 127
        %314 = vset.pattern.permute.xlu0 0
        %315 = vperm.xlu0 %314, %v280
        %v316 = vpop.permute.xlu0 %315
        %317 = vset.pattern.permute.xlu0 0
        %318 = vperm.xlu0 %317, %v281
        %v319 = vpop.permute.xlu0 %318
        %320 = vset.pattern.permute.xlu0 0
        %321 = vperm.xlu0 %320, %v282
        %v322 = vpop.permute.xlu0 %321
        %323 = vset.pattern.permute.xlu0 0
        %324 = vperm.xlu0 %323, %v283
        %v325 = vpop.permute.xlu0 %324
        %326 = vset.pattern.permute.xlu0 0
        %327 = vperm.xlu0 %326, %v284
        %v328 = vpop.permute.xlu0 %327
        %329 = vset.pattern.permute.xlu0 0
        %330 = vperm.xlu0 %329, %v285
        %v331 = vpop.permute.xlu0 %330
        %332 = vset.pattern.permute.xlu0 0
        %333 = vperm.xlu0 %332, %v286
        %v334 = vpop.permute.xlu0 %333
        %335 = vset.pattern.permute.xlu0 0
        %336 = vperm.xlu0 %335, %v287
        %v337 = vpop.permute.xlu0 %336
        %338 = vset.pattern.permute.xlu0 0
        %339 = vperm.xlu0 %338, %v288
        %v340 = vpop.permute.xlu0 %339
        %341 = vset.pattern.permute.xlu0 0
        %342 = vperm.xlu0 %341, %v289
        %v343 = vpop.permute.xlu0 %342
        %344 = vset.pattern.permute.xlu0 0
        %345 = vperm.xlu0 %344, %v290
        %v346 = vpop.permute.xlu0 %345
        %347 = vset.pattern.permute.xlu0 0
        %348 = vperm.xlu0 %347, %v291
        %v349 = vpop.permute.xlu0 %348
        %350 = vset.pattern.permute.xlu0 0
        %351 = vperm.xlu0 %350, %v292
        %v352 = vpop.permute.xlu0 %351
        %353 = vset.pattern.permute.xlu0 0
        %354 = vperm.xlu0 %353, %v293
        %v355 = vpop.permute.xlu0 %354
        %356 = vset.pattern.permute.xlu0 0
        %357 = vperm.xlu0 %356, %v294
        %v358 = vpop.permute.xlu0 %357
        %359 = vset.pattern.permute.xlu0 0
        %360 = vperm.xlu0 %359, %v295
        %v361 = vpop.permute.xlu0 %360
        %362 = vset.pattern.permute.xlu0 0
        %363 = vperm.xlu0 %362, %v296
        %v364 = vpop.permute.xlu0 %363
        %365 = vset.pattern.permute.xlu0 0
        %366 = vperm.xlu0 %365, %v297
        %v367 = vpop.permute.xlu0 %366
        %368 = vset.pattern.permute.xlu0 0
        %369 = vperm.xlu0 %368, %v298
        %v370 = vpop.permute.xlu0 %369
        %371 = vset.pattern.permute.xlu0 0
        %372 = vperm.xlu0 %371, %v299
        %v373 = vpop.permute.xlu0 %372
        %374 = vset.pattern.permute.xlu0 0
        %375 = vperm.xlu0 %374, %v300
        %v376 = vpop.permute.xlu0 %375
        %377 = vset.pattern.permute.xlu0 0
        %378 = vperm.xlu0 %377, %v301
        %v379 = vpop.permute.xlu0 %378
        %380 = vset.pattern.permute.xlu0 0
        %381 = vperm.xlu0 %380, %v302
        %v382 = vpop.permute.xlu0 %381
        %383 = vset.pattern.permute.xlu0 0
        %384 = vperm.xlu0 %383, %v303
        %v385 = vpop.permute.xlu0 %384
        %386 = vset.pattern.permute.xlu0 0
        %387 = vperm.xlu0 %386, %v304
        %v388 = vpop.permute.xlu0 %387
        %389 = vset.pattern.permute.xlu0 0
        %390 = vperm.xlu0 %389, %v305
        %v391 = vpop.permute.xlu0 %390
        %392 = vset.pattern.permute.xlu0 0
        %393 = vperm.xlu0 %392, %v306
        %v394 = vpop.permute.xlu0 %393
        %395 = vset.pattern.permute.xlu0 0
        %396 = vperm.xlu0 %395, %v307
        %v397 = vpop.permute.xlu0 %396
        %398 = vset.pattern.permute.xlu0 0
        %399 = vperm.xlu0 %398, %v308
        %v400 = vpop.permute.xlu0 %399
        %401 = vset.pattern.permute.xlu0 0
        %402 = vperm.xlu0 %401, %v309
        %v403 = vpop.permute.xlu0 %402
        %404 = vset.pattern.permute.xlu0 0
        %405 = vperm.xlu0 %404, %v310
        %v406 = vpop.permute.xlu0 %405
        %407 = vset.pattern.permute.xlu0 0
        %408 = vperm.xlu0 %407, %v311
        %v409 = vpop.permute.xlu0 %408
        %vm410 = vcmp.eq.s32.totalorder %v316, %v313
        %vm411 = vcmp.eq.s32.totalorder %v319, %v313
        %vm412 = vcmp.eq.s32.totalorder %v322, %v313
        %vm413 = vcmp.eq.s32.totalorder %v325, %v313
        %vm414 = vcmp.eq.s32.totalorder %v328, %v313
        %vm415 = vcmp.eq.s32.totalorder %v331, %v313
        %vm416 = vcmp.eq.s32.totalorder %v334, %v313
        %vm417 = vcmp.eq.s32.totalorder %v337, %v313
        %vm418 = vcmp.eq.s32.totalorder %v340, %v313
        %vm419 = vcmp.eq.s32.totalorder %v343, %v313
        %vm420 = vcmp.eq.s32.totalorder %v346, %v313
        %vm421 = vcmp.eq.s32.totalorder %v349, %v313
        %vm422 = vcmp.eq.s32.totalorder %v352, %v313
        %vm423 = vcmp.eq.s32.totalorder %v355, %v313
        %vm424 = vcmp.eq.s32.totalorder %v358, %v313
        %vm425 = vcmp.eq.s32.totalorder %v361, %v313
        %vm426 = vcmp.eq.s32.totalorder %v364, %v313
        %vm427 = vcmp.eq.s32.totalorder %v367, %v313
        %vm428 = vcmp.eq.s32.totalorder %v370, %v313
        %vm429 = vcmp.eq.s32.totalorder %v373, %v313
        %vm430 = vcmp.eq.s32.totalorder %v376, %v313
        %vm431 = vcmp.eq.s32.totalorder %v379, %v313
        %vm432 = vcmp.eq.s32.totalorder %v382, %v313
        %vm433 = vcmp.eq.s32.totalorder %v385, %v313
        %vm434 = vcmp.eq.s32.totalorder %v388, %v313
        %vm435 = vcmp.eq.s32.totalorder %v391, %v313
        %vm436 = vcmp.eq.s32.totalorder %v394, %v313
        %vm437 = vcmp.eq.s32.totalorder %v397, %v313
        %vm438 = vcmp.eq.s32.totalorder %v400, %v313
        %vm439 = vcmp.eq.s32.totalorder %v403, %v313
        %vm440 = vcmp.eq.s32.totalorder %v406, %v313
        %vm441 = vcmp.eq.s32.totalorder %v409, %v313
        %v442 = vsel %vm410, 1, 0
        %v443 = vsel %vm411, 1, 0
        %v444 = vsel %vm412, 1, 0
        %v445 = vsel %vm413, 1, 0
        %v446 = vsel %vm414, 1, 0
        %v447 = vsel %vm415, 1, 0
        %v448 = vsel %vm416, 1, 0
        %v449 = vsel %vm417, 1, 0
        %v450 = vsel %vm418, 1, 0
        %v451 = vsel %vm419, 1, 0
        %v452 = vsel %vm420, 1, 0
        %v453 = vsel %vm421, 1, 0
        %v454 = vsel %vm422, 1, 0
        %v455 = vsel %vm423, 1, 0
        %v456 = vsel %vm424, 1, 0
        %v457 = vsel %vm425, 1, 0
        %v458 = vsel %vm426, 1, 0
        %v459 = vsel %vm427, 1, 0
        %v460 = vsel %vm428, 1, 0
        %v461 = vsel %vm429, 1, 0
        %v462 = vsel %vm430, 1, 0
        %v463 = vsel %vm431, 1, 0
        %v464 = vsel %vm432, 1, 0
        %v465 = vsel %vm433, 1, 0
        %v466 = vsel %vm434, 1, 0
        %v467 = vsel %vm435, 1, 0
        %v468 = vsel %vm436, 1, 0
        %v469 = vsel %vm437, 1, 0
        %v470 = vsel %vm438, 1, 0
        %v471 = vsel %vm439, 1, 0
        %v472 = vsel %vm440, 1, 0
        %v473 = vsel %vm441, 1, 0
        %v474 = vcvt.s32.f32 %v442
        %v475 = vcvt.s32.f32 %v443
        %v476 = vcvt.s32.f32 %v444
        %v477 = vcvt.s32.f32 %v445
        %v478 = vcvt.s32.f32 %v446
        %v479 = vcvt.s32.f32 %v447
        %v480 = vcvt.s32.f32 %v448
        %v481 = vcvt.s32.f32 %v449
        %v482 = vcvt.s32.f32 %v450
        %v483 = vcvt.s32.f32 %v451
        %v484 = vcvt.s32.f32 %v452
        %v485 = vcvt.s32.f32 %v453
        %v486 = vcvt.s32.f32 %v454
        %v487 = vcvt.s32.f32 %v455
        %v488 = vcvt.s32.f32 %v456
        %v489 = vcvt.s32.f32 %v457
        %v490 = vcvt.s32.f32 %v458
        %v491 = vcvt.s32.f32 %v459
        %v492 = vcvt.s32.f32 %v460
        %v493 = vcvt.s32.f32 %v461
        %v494 = vcvt.s32.f32 %v462
        %v495 = vcvt.s32.f32 %v463
        %v496 = vcvt.s32.f32 %v464
        %v497 = vcvt.s32.f32 %v465
        %v498 = vcvt.s32.f32 %v466
        %v499 = vcvt.s32.f32 %v467
        %v500 = vcvt.s32.f32 %v468
        %v501 = vcvt.s32.f32 %v469
        %v502 = vcvt.s32.f32 %v470
        %v503 = vcvt.s32.f32 %v471
        %v504 = vcvt.s32.f32 %v472
        %v505 = vcvt.s32.f32 %v473
        %v506 = vadd.f32 %v474, 0.0
        %v507 = vadd.f32 %v475, 0.0
        %v508 = vadd.f32 %v476, 0.0
        %v509 = vadd.f32 %v477, 0.0
        %v510 = vadd.f32 %v478, 0.0
        %v511 = vadd.f32 %v479, 0.0
        %v512 = vadd.f32 %v480, 0.0
        %v513 = vadd.f32 %v481, 0.0
        %v514 = vadd.f32 %v482, 0.0
        %v515 = vadd.f32 %v483, 0.0
        %v516 = vadd.f32 %v484, 0.0
        %v517 = vadd.f32 %v485, 0.0
        %v518 = vadd.f32 %v486, 0.0
        %v519 = vadd.f32 %v487, 0.0
        %v520 = vadd.f32 %v488, 0.0
        %v521 = vadd.f32 %v489, 0.0
        %v522 = vadd.f32 %v490, 0.0
        %v523 = vadd.f32 %v491, 0.0
        %v524 = vadd.f32 %v492, 0.0
        %v525 = vadd.f32 %v493, 0.0
        %v526 = vadd.f32 %v494, 0.0
        %v527 = vadd.f32 %v495, 0.0
        %v528 = vadd.f32 %v496, 0.0
        %v529 = vadd.f32 %v497, 0.0
        %v530 = vadd.f32 %v498, 0.0
        %v531 = vadd.f32 %v499, 0.0
        %v532 = vadd.f32 %v500, 0.0
        %v533 = vadd.f32 %v501, 0.0
        %v534 = vadd.f32 %v502, 0.0
        %v535 = vadd.f32 %v503, 0.0
        %v536 = vadd.f32 %v504, 0.0
        %v537 = vadd.f32 %v505, 0.0
        %538 = vset.pattern.permute.xlu0 1
        %539 = vperm.xlu0 %538, %v280
        %v540 = vpop.permute.xlu0 %539
        %541 = vset.pattern.permute.xlu0 1
        %542 = vperm.xlu0 %541, %v281
        %v543 = vpop.permute.xlu0 %542
        %544 = vset.pattern.permute.xlu0 1
        %545 = vperm.xlu0 %544, %v282
        %v546 = vpop.permute.xlu0 %545
        %547 = vset.pattern.permute.xlu0 1
        %548 = vperm.xlu0 %547, %v283
        %v549 = vpop.permute.xlu0 %548
        %550 = vset.pattern.permute.xlu0 1
        %551 = vperm.xlu0 %550, %v284
        %v552 = vpop.permute.xlu0 %551
        %553 = vset.pattern.permute.xlu0 1
        %554 = vperm.xlu0 %553, %v285
        %v555 = vpop.permute.xlu0 %554
        %556 = vset.pattern.permute.xlu0 1
        %557 = vperm.xlu0 %556, %v286
        %v558 = vpop.permute.xlu0 %557
        %559 = vset.pattern.permute.xlu0 1
        %560 = vperm.xlu0 %559, %v287
        %v561 = vpop.permute.xlu0 %560
        %562 = vset.pattern.permute.xlu0 1
        %563 = vperm.xlu0 %562, %v288
        %v564 = vpop.permute.xlu0 %563
        %565 = vset.pattern.permute.xlu0 1
        %566 = vperm.xlu0 %565, %v289
        %v567 = vpop.permute.xlu0 %566
        %568 = vset.pattern.permute.xlu0 1
        %569 = vperm.xlu0 %568, %v290
        %v570 = vpop.permute.xlu0 %569
        %571 = vset.pattern.permute.xlu0 1
        %572 = vperm.xlu0 %571, %v291
        %v573 = vpop.permute.xlu0 %572
        %574 = vset.pattern.permute.xlu0 1
        %575 = vperm.xlu0 %574, %v292
        %v576 = vpop.permute.xlu0 %575
        %577 = vset.pattern.permute.xlu0 1
        %578 = vperm.xlu0 %577, %v293
        %v579 = vpop.permute.xlu0 %578
        %580 = vset.pattern.permute.xlu0 1
        %581 = vperm.xlu0 %580, %v294
        %v582 = vpop.permute.xlu0 %581
        %583 = vset.pattern.permute.xlu0 1
        %584 = vperm.xlu0 %583, %v295
        %v585 = vpop.permute.xlu0 %584
        %586 = vset.pattern.permute.xlu0 1
        %587 = vperm.xlu0 %586, %v296
        %v588 = vpop.permute.xlu0 %587
        %589 = vset.pattern.permute.xlu0 1
        %590 = vperm.xlu0 %589, %v297
        %v591 = vpop.permute.xlu0 %590
        %592 = vset.pattern.permute.xlu0 1
        %593 = vperm.xlu0 %592, %v298
        %v594 = vpop.permute.xlu0 %593
        %595 = vset.pattern.permute.xlu0 1
        %596 = vperm.xlu0 %595, %v299
        %v597 = vpop.permute.xlu0 %596
        %598 = vset.pattern.permute.xlu0 1
        %599 = vperm.xlu0 %598, %v300
        %v600 = vpop.permute.xlu0 %599
        %601 = vset.pattern.permute.xlu0 1
        %602 = vperm.xlu0 %601, %v301
        %v603 = vpop.permute.xlu0 %602
        %604 = vset.pattern.permute.xlu0 1
        %605 = vperm.xlu0 %604, %v302
        %v606 = vpop.permute.xlu0 %605
        %607 = vset.pattern.permute.xlu0 1
        %608 = vperm.xlu0 %607, %v303
        %v609 = vpop.permute.xlu0 %608
        %610 = vset.pattern.permute.xlu0 1
        %611 = vperm.xlu0 %610, %v304
        %v612 = vpop.permute.xlu0 %611
        %613 = vset.pattern.permute.xlu0 1
        %614 = vperm.xlu0 %613, %v305
        %v615 = vpop.permute.xlu0 %614
        %616 = vset.pattern.permute.xlu0 1
        %617 = vperm.xlu0 %616, %v306
        %v618 = vpop.permute.xlu0 %617
        %619 = vset.pattern.permute.xlu0 1
        %620 = vperm.xlu0 %619, %v307
        %v621 = vpop.permute.xlu0 %620
        %622 = vset.pattern.permute.xlu0 1
        %623 = vperm.xlu0 %622, %v308
        %v624 = vpop.permute.xlu0 %623
        %625 = vset.pattern.permute.xlu0 1
        %626 = vperm.xlu0 %625, %v309
        %v627 = vpop.permute.xlu0 %626
        %628 = vset.pattern.permute.xlu0 1
        %629 = vperm.xlu0 %628, %v310
        %v630 = vpop.permute.xlu0 %629
        %631 = vset.pattern.permute.xlu0 1
        %632 = vperm.xlu0 %631, %v311
        %v633 = vpop.permute.xlu0 %632
        %vm634 = vcmp.eq.s32.totalorder %v540, %v313
        %vm635 = vcmp.eq.s32.totalorder %v543, %v313
        %vm636 = vcmp.eq.s32.totalorder %v546, %v313
        %vm637 = vcmp.eq.s32.totalorder %v549, %v313
        %vm638 = vcmp.eq.s32.totalorder %v552, %v313
        %vm639 = vcmp.eq.s32.totalorder %v555, %v313
        %vm640 = vcmp.eq.s32.totalorder %v558, %v313
        %vm641 = vcmp.eq.s32.totalorder %v561, %v313
        %vm642 = vcmp.eq.s32.totalorder %v564, %v313
        %vm643 = vcmp.eq.s32.totalorder %v567, %v313
        %vm644 = vcmp.eq.s32.totalorder %v570, %v313
        %vm645 = vcmp.eq.s32.totalorder %v573, %v313
        %vm646 = vcmp.eq.s32.totalorder %v576, %v313
        %vm647 = vcmp.eq.s32.totalorder %v579, %v313
        %vm648 = vcmp.eq.s32.totalorder %v582, %v313
        %vm649 = vcmp.eq.s32.totalorder %v585, %v313
        %vm650 = vcmp.eq.s32.totalorder %v588, %v313
        %vm651 = vcmp.eq.s32.totalorder %v591, %v313
        %vm652 = vcmp.eq.s32.totalorder %v594, %v313
        %vm653 = vcmp.eq.s32.totalorder %v597, %v313
        %vm654 = vcmp.eq.s32.totalorder %v600, %v313
        %vm655 = vcmp.eq.s32.totalorder %v603, %v313
        %vm656 = vcmp.eq.s32.totalorder %v606, %v313
        %vm657 = vcmp.eq.s32.totalorder %v609, %v313
        %vm658 = vcmp.eq.s32.totalorder %v612, %v313
        %vm659 = vcmp.eq.s32.totalorder %v615, %v313
        %vm660 = vcmp.eq.s32.totalorder %v618, %v313
        %vm661 = vcmp.eq.s32.totalorder %v621, %v313
        %vm662 = vcmp.eq.s32.totalorder %v624, %v313
        %vm663 = vcmp.eq.s32.totalorder %v627, %v313
        %vm664 = vcmp.eq.s32.totalorder %v630, %v313
        %vm665 = vcmp.eq.s32.totalorder %v633, %v313
        %v666 = vsel %vm634, 1, 0
        %v667 = vsel %vm635, 1, 0
        %v668 = vsel %vm636, 1, 0
        %v669 = vsel %vm637, 1, 0
        %v670 = vsel %vm638, 1, 0
        %v671 = vsel %vm639, 1, 0
        %v672 = vsel %vm640, 1, 0
        %v673 = vsel %vm641, 1, 0
        %v674 = vsel %vm642, 1, 0
        %v675 = vsel %vm643, 1, 0
        %v676 = vsel %vm644, 1, 0
        %v677 = vsel %vm645, 1, 0
        %v678 = vsel %vm646, 1, 0
        %v679 = vsel %vm647, 1, 0
        %v680 = vsel %vm648, 1, 0
        %v681 = vsel %vm649, 1, 0
        %v682 = vsel %vm650, 1, 0
        %v683 = vsel %vm651, 1, 0
        %v684 = vsel %vm652, 1, 0
        %v685 = vsel %vm653, 1, 0
        %v686 = vsel %vm654, 1, 0
        %v687 = vsel %vm655, 1, 0
        %v688 = vsel %vm656, 1, 0
        %v689 = vsel %vm657, 1, 0
        %v690 = vsel %vm658, 1, 0
        %v691 = vsel %vm659, 1, 0
        %v692 = vsel %vm660, 1, 0
        %v693 = vsel %vm661, 1, 0
        %v694 = vsel %vm662, 1, 0
        %v695 = vsel %vm663, 1, 0
        %v696 = vsel %vm664, 1, 0
        %v697 = vsel %vm665, 1, 0
        %v698 = vcvt.s32.f32 %v666
        %v699 = vcvt.s32.f32 %v667
        %v700 = vcvt.s32.f32 %v668
        %v701 = vcvt.s32.f32 %v669
        %v702 = vcvt.s32.f32 %v670
        %v703 = vcvt.s32.f32 %v671
        %v704 = vcvt.s32.f32 %v672
        %v705 = vcvt.s32.f32 %v673
        %v706 = vcvt.s32.f32 %v674
        %v707 = vcvt.s32.f32 %v675
        %v708 = vcvt.s32.f32 %v676
        %v709 = vcvt.s32.f32 %v677
        %v710 = vcvt.s32.f32 %v678
        %v711 = vcvt.s32.f32 %v679
        %v712 = vcvt.s32.f32 %v680
        %v713 = vcvt.s32.f32 %v681
        %v714 = vcvt.s32.f32 %v682
        %v715 = vcvt.s32.f32 %v683
        %v716 = vcvt.s32.f32 %v684
        %v717 = vcvt.s32.f32 %v685
        %v718 = vcvt.s32.f32 %v686
        %v719 = vcvt.s32.f32 %v687
        %v720 = vcvt.s32.f32 %v688
        %v721 = vcvt.s32.f32 %v689
        %v722 = vcvt.s32.f32 %v690
        %v723 = vcvt.s32.f32 %v691
        %v724 = vcvt.s32.f32 %v692
        %v725 = vcvt.s32.f32 %v693
        %v726 = vcvt.s32.f32 %v694
        %v727 = vcvt.s32.f32 %v695
        %v728 = vcvt.s32.f32 %v696
        %v729 = vcvt.s32.f32 %v697
        %v730 = vadd.f32 %v506, %v698
        %v731 = vadd.f32 %v507, %v699
        %v732 = vadd.f32 %v508, %v700
        %v733 = vadd.f32 %v509, %v701
        %v734 = vadd.f32 %v510, %v702
        %v735 = vadd.f32 %v511, %v703
        %v736 = vadd.f32 %v512, %v704
        %v737 = vadd.f32 %v513, %v705
        %v738 = vadd.f32 %v514, %v706
        %v739 = vadd.f32 %v515, %v707
        %v740 = vadd.f32 %v516, %v708
        %v741 = vadd.f32 %v517, %v709
        %v742 = vadd.f32 %v518, %v710
        %v743 = vadd.f32 %v519, %v711
        %v744 = vadd.f32 %v520, %v712
        %v745 = vadd.f32 %v521, %v713
        %v746 = vadd.f32 %v522, %v714
        %v747 = vadd.f32 %v523, %v715
        %v748 = vadd.f32 %v524, %v716
        %v749 = vadd.f32 %v525, %v717
        %v750 = vadd.f32 %v526, %v718
        %v751 = vadd.f32 %v527, %v719
        %v752 = vadd.f32 %v528, %v720
        %v753 = vadd.f32 %v529, %v721
        %v754 = vadd.f32 %v530, %v722
        %v755 = vadd.f32 %v531, %v723
        %v756 = vadd.f32 %v532, %v724
        %v757 = vadd.f32 %v533, %v725
        %v758 = vadd.f32 %v534, %v726
        %v759 = vadd.f32 %v535, %v727
        %v760 = vadd.f32 %v536, %v728
        %v761 = vadd.f32 %v537, %v729
        %762 = vset.pattern.permute.xlu0 2
        %763 = vperm.xlu0 %762, %v280
        %v764 = vpop.permute.xlu0 %763
        %765 = vset.pattern.permute.xlu0 2
        %766 = vperm.xlu0 %765, %v281
        %v767 = vpop.permute.xlu0 %766
        %768 = vset.pattern.permute.xlu0 2
        %769 = vperm.xlu0 %768, %v282
        %v770 = vpop.permute.xlu0 %769
        %771 = vset.pattern.permute.xlu0 2
        %772 = vperm.xlu0 %771, %v283
        %v773 = vpop.permute.xlu0 %772
        %774 = vset.pattern.permute.xlu0 2
        %775 = vperm.xlu0 %774, %v284
        %v776 = vpop.permute.xlu0 %775
        %777 = vset.pattern.permute.xlu0 2
        %778 = vperm.xlu0 %777, %v285
        %v779 = vpop.permute.xlu0 %778
        %780 = vset.pattern.permute.xlu0 2
        %781 = vperm.xlu0 %780, %v286
        %v782 = vpop.permute.xlu0 %781
        %783 = vset.pattern.permute.xlu0 2
        %784 = vperm.xlu0 %783, %v287
        %v785 = vpop.permute.xlu0 %784
        %786 = vset.pattern.permute.xlu0 2
        %787 = vperm.xlu0 %786, %v288
        %v788 = vpop.permute.xlu0 %787
        %789 = vset.pattern.permute.xlu0 2
        %790 = vperm.xlu0 %789, %v289
        %v791 = vpop.permute.xlu0 %790
        %792 = vset.pattern.permute.xlu0 2
        %793 = vperm.xlu0 %792, %v290
        %v794 = vpop.permute.xlu0 %793
        %795 = vset.pattern.permute.xlu0 2
        %796 = vperm.xlu0 %795, %v291
        %v797 = vpop.permute.xlu0 %796
        %798 = vset.pattern.permute.xlu0 2
        %799 = vperm.xlu0 %798, %v292
        %v800 = vpop.permute.xlu0 %799
        %801 = vset.pattern.permute.xlu0 2
        %802 = vperm.xlu0 %801, %v293
        %v803 = vpop.permute.xlu0 %802
        %804 = vset.pattern.permute.xlu0 2
        %805 = vperm.xlu0 %804, %v294
        %v806 = vpop.permute.xlu0 %805
        %807 = vset.pattern.permute.xlu0 2
        %808 = vperm.xlu0 %807, %v295
        %v809 = vpop.permute.xlu0 %808
        %810 = vset.pattern.permute.xlu0 2
        %811 = vperm.xlu0 %810, %v296
        %v812 = vpop.permute.xlu0 %811
        %813 = vset.pattern.permute.xlu0 2
        %814 = vperm.xlu0 %813, %v297
        %v815 = vpop.permute.xlu0 %814
        %816 = vset.pattern.permute.xlu0 2
        %817 = vperm.xlu0 %816, %v298
        %v818 = vpop.permute.xlu0 %817
        %819 = vset.pattern.permute.xlu0 2
        %820 = vperm.xlu0 %819, %v299
        %v821 = vpop.permute.xlu0 %820
        %822 = vset.pattern.permute.xlu0 2
        %823 = vperm.xlu0 %822, %v300
        %v824 = vpop.permute.xlu0 %823
        %825 = vset.pattern.permute.xlu0 2
        %826 = vperm.xlu0 %825, %v301
        %v827 = vpop.permute.xlu0 %826
        %828 = vset.pattern.permute.xlu0 2
        %829 = vperm.xlu0 %828, %v302
        %v830 = vpop.permute.xlu0 %829
        %831 = vset.pattern.permute.xlu0 2
        %832 = vperm.xlu0 %831, %v303
        %v833 = vpop.permute.xlu0 %832
        %834 = vset.pattern.permute.xlu0 2
        %835 = vperm.xlu0 %834, %v304
        %v836 = vpop.permute.xlu0 %835
        %837 = vset.pattern.permute.xlu0 2
        %838 = vperm.xlu0 %837, %v305
        %v839 = vpop.permute.xlu0 %838
        %840 = vset.pattern.permute.xlu0 2
        %841 = vperm.xlu0 %840, %v306
        %v842 = vpop.permute.xlu0 %841
        %843 = vset.pattern.permute.xlu0 2
        %844 = vperm.xlu0 %843, %v307
        %v845 = vpop.permute.xlu0 %844
        %846 = vset.pattern.permute.xlu0 2
        %847 = vperm.xlu0 %846, %v308
        %v848 = vpop.permute.xlu0 %847
        %849 = vset.pattern.permute.xlu0 2
        %850 = vperm.xlu0 %849, %v309
        %v851 = vpop.permute.xlu0 %850
        %852 = vset.pattern.permute.xlu0 2
        %853 = vperm.xlu0 %852, %v310
        %v854 = vpop.permute.xlu0 %853
        %855 = vset.pattern.permute.xlu0 2
        %856 = vperm.xlu0 %855, %v311
        %v857 = vpop.permute.xlu0 %856
        %vm858 = vcmp.eq.s32.totalorder %v764, %v313
        %vm859 = vcmp.eq.s32.totalorder %v767, %v313
        %vm860 = vcmp.eq.s32.totalorder %v770, %v313
        %vm861 = vcmp.eq.s32.totalorder %v773, %v313
        %vm862 = vcmp.eq.s32.totalorder %v776, %v313
        %vm863 = vcmp.eq.s32.totalorder %v779, %v313
        %vm864 = vcmp.eq.s32.totalorder %v782, %v313
        %vm865 = vcmp.eq.s32.totalorder %v785, %v313
        %vm866 = vcmp.eq.s32.totalorder %v788, %v313
        %vm867 = vcmp.eq.s32.totalorder %v791, %v313
        %vm868 = vcmp.eq.s32.totalorder %v794, %v313
        %vm869 = vcmp.eq.s32.totalorder %v797, %v313
        %vm870 = vcmp.eq.s32.totalorder %v800, %v313
        %vm871 = vcmp.eq.s32.totalorder %v803, %v313
        %vm872 = vcmp.eq.s32.totalorder %v806, %v313
        %vm873 = vcmp.eq.s32.totalorder %v809, %v313
        %vm874 = vcmp.eq.s32.totalorder %v812, %v313
        %vm875 = vcmp.eq.s32.totalorder %v815, %v313
        %vm876 = vcmp.eq.s32.totalorder %v818, %v313
        %vm877 = vcmp.eq.s32.totalorder %v821, %v313
        %vm878 = vcmp.eq.s32.totalorder %v824, %v313
        %vm879 = vcmp.eq.s32.totalorder %v827, %v313
        %vm880 = vcmp.eq.s32.totalorder %v830, %v313
        %vm881 = vcmp.eq.s32.totalorder %v833, %v313
        %vm882 = vcmp.eq.s32.totalorder %v836, %v313
        %vm883 = vcmp.eq.s32.totalorder %v839, %v313
        %vm884 = vcmp.eq.s32.totalorder %v842, %v313
        %vm885 = vcmp.eq.s32.totalorder %v845, %v313
        %vm886 = vcmp.eq.s32.totalorder %v848, %v313
        %vm887 = vcmp.eq.s32.totalorder %v851, %v313
        %vm888 = vcmp.eq.s32.totalorder %v854, %v313
        %vm889 = vcmp.eq.s32.totalorder %v857, %v313
        %v890 = vsel %vm858, 1, 0
        %v891 = vsel %vm859, 1, 0
        %v892 = vsel %vm860, 1, 0
        %v893 = vsel %vm861, 1, 0
        %v894 = vsel %vm862, 1, 0
        %v895 = vsel %vm863, 1, 0
        %v896 = vsel %vm864, 1, 0
        %v897 = vsel %vm865, 1, 0
        %v898 = vsel %vm866, 1, 0
        %v899 = vsel %vm867, 1, 0
        %v900 = vsel %vm868, 1, 0
        %v901 = vsel %vm869, 1, 0
        %v902 = vsel %vm870, 1, 0
        %v903 = vsel %vm871, 1, 0
        %v904 = vsel %vm872, 1, 0
        %v905 = vsel %vm873, 1, 0
        %v906 = vsel %vm874, 1, 0
        %v907 = vsel %vm875, 1, 0
        %v908 = vsel %vm876, 1, 0
        %v909 = vsel %vm877, 1, 0
        %v910 = vsel %vm878, 1, 0
        %v911 = vsel %vm879, 1, 0
        %v912 = vsel %vm880, 1, 0
        %v913 = vsel %vm881, 1, 0
        %v914 = vsel %vm882, 1, 0
        %v915 = vsel %vm883, 1, 0
        %v916 = vsel %vm884, 1, 0
        %v917 = vsel %vm885, 1, 0
        %v918 = vsel %vm886, 1, 0
        %v919 = vsel %vm887, 1, 0
        %v920 = vsel %vm888, 1, 0
        %v921 = vsel %vm889, 1, 0
        %v922 = vcvt.s32.f32 %v890
        %v923 = vcvt.s32.f32 %v891
        %v924 = vcvt.s32.f32 %v892
        %v925 = vcvt.s32.f32 %v893
        %v926 = vcvt.s32.f32 %v894
        %v927 = vcvt.s32.f32 %v895
        %v928 = vcvt.s32.f32 %v896
        %v929 = vcvt.s32.f32 %v897
        %v930 = vcvt.s32.f32 %v898
        %v931 = vcvt.s32.f32 %v899
        %v932 = vcvt.s32.f32 %v900
        %v933 = vcvt.s32.f32 %v901
        %v934 = vcvt.s32.f32 %v902
        %v935 = vcvt.s32.f32 %v903
        %v936 = vcvt.s32.f32 %v904
        %v937 = vcvt.s32.f32 %v905
        %v938 = vcvt.s32.f32 %v906
        %v939 = vcvt.s32.f32 %v907
        %v940 = vcvt.s32.f32 %v908
        %v941 = vcvt.s32.f32 %v909
        %v942 = vcvt.s32.f32 %v910
        %v943 = vcvt.s32.f32 %v911
        %v944 = vcvt.s32.f32 %v912
        %v945 = vcvt.s32.f32 %v913
        %v946 = vcvt.s32.f32 %v914
        %v947 = vcvt.s32.f32 %v915
        %v948 = vcvt.s32.f32 %v916
        %v949 = vcvt.s32.f32 %v917
        %v950 = vcvt.s32.f32 %v918
        %v951 = vcvt.s32.f32 %v919
        %v952 = vcvt.s32.f32 %v920
        %v953 = vcvt.s32.f32 %v921
        %v954 = vadd.f32 %v730, %v922
        %v955 = vadd.f32 %v731, %v923
        %v956 = vadd.f32 %v732, %v924
        %v957 = vadd.f32 %v733, %v925
        %v958 = vadd.f32 %v734, %v926
        %v959 = vadd.f32 %v735, %v927
        %v960 = vadd.f32 %v736, %v928
        %v961 = vadd.f32 %v737, %v929
        %v962 = vadd.f32 %v738, %v930
        %v963 = vadd.f32 %v739, %v931
        %v964 = vadd.f32 %v740, %v932
        %v965 = vadd.f32 %v741, %v933
        %v966 = vadd.f32 %v742, %v934
        %v967 = vadd.f32 %v743, %v935
        %v968 = vadd.f32 %v744, %v936
        %v969 = vadd.f32 %v745, %v937
        %v970 = vadd.f32 %v746, %v938
        %v971 = vadd.f32 %v747, %v939
        %v972 = vadd.f32 %v748, %v940
        %v973 = vadd.f32 %v749, %v941
        %v974 = vadd.f32 %v750, %v942
        %v975 = vadd.f32 %v751, %v943
        %v976 = vadd.f32 %v752, %v944
        %v977 = vadd.f32 %v753, %v945
        %v978 = vadd.f32 %v754, %v946
        %v979 = vadd.f32 %v755, %v947
        %v980 = vadd.f32 %v756, %v948
        %v981 = vadd.f32 %v757, %v949
        %v982 = vadd.f32 %v758, %v950
        %v983 = vadd.f32 %v759, %v951
        %v984 = vadd.f32 %v760, %v952
        %v985 = vadd.f32 %v761, %v953
        %v986 = vld [vmem:[%s2] sm:$0xff]
        %v987 = vld [vmem:[%s2 + $0x8] sm:$0xff]
        %v988 = vld [vmem:[%s245] sm:$0xff]
        %v989 = vld [vmem:[%s245 + $0x8] sm:$0xff]
        %v990 = vld [vmem:[%s245 + $0x10] sm:$0xff]
        %v991 = vld [vmem:[%s245 + $0x18] sm:$0xff]
        %v992 = vld [vmem:[%s245 + $0x20] sm:$0xff]
        %v993 = vld [vmem:[%s245 + $0x28] sm:$0xff]
        %v994 = vld [vmem:[%s245 + $0x30] sm:$0xff]
        %v995 = vld [vmem:[%s245 + $0x38] sm:$0xff]
        %v996 = vld [vmem:[%s245 + $0x40] sm:$0xff]
        %v997 = vld [vmem:[%s245 + $0x48] sm:$0xff]
        %v998 = vld [vmem:[%s245 + $0x50] sm:$0xff]
        %v999 = vld [vmem:[%s245 + $0x58] sm:$0xff]
        %v1000 = vld [vmem:[%s245 + $0x60] sm:$0xff]
        %v1001 = vld [vmem:[%s245 + $0x68] sm:$0xff]
        %v1002 = vld [vmem:[%s245 + $0x70] sm:$0xff]
        %v1003 = vld [vmem:[%s245 + $0x78] sm:$0xff]
        %v1004 = vld [vmem:[%s245 + $0x80] sm:$0xff]
        %v1005 = vld [vmem:[%s245 + $0x88] sm:$0xff]
        %v1006 = vld [vmem:[%s245 + $0x90] sm:$0xff]
        %v1007 = vld [vmem:[%s245 + $0x98] sm:$0xff]
        %v1008 = vld [vmem:[%s245 + $0xa0] sm:$0xff]
        %v1009 = vld [vmem:[%s245 + $0xa8] sm:$0xff]
        %v1010 = vld [vmem:[%s245 + $0xb0] sm:$0xff]
        %v1011 = vld [vmem:[%s245 + $0xb8] sm:$0xff]
        %v1012 = vld [vmem:[%s245 + $0xc0] sm:$0xff]
        %v1013 = vld [vmem:[%s245 + $0xc8] sm:$0xff]
        %v1014 = vld [vmem:[%s245 + $0xd0] sm:$0xff]
        %v1015 = vld [vmem:[%s245 + $0xd8] sm:$0xff]
        %v1016 = vld [vmem:[%s245 + $0xe0] sm:$0xff]
        %v1017 = vld [vmem:[%s245 + $0xe8] sm:$0xff]
        %v1018 = vld [vmem:[%s245 + $0xf0] sm:$0xff]
        %v1019 = vld [vmem:[%s245 + $0xf8] sm:$0xff]
        %v1020 = vld [vmem:[%s3] sm:$0xff]
        %v1021 = vld [vmem:[%s3 + $0x8] sm:$0xff]
        %v1022 = vld [vmem:[%s3 + $0x10] sm:$0xff]
        %v1023 = vld [vmem:[%s3 + $0x18] sm:$0xff]
        %v1024 = vld [vmem:[%s3 + $0x20] sm:$0xff]
        %v1025 = vld [vmem:[%s3 + $0x28] sm:$0xff]
        %v1026 = vld [vmem:[%s3 + $0x30] sm:$0xff]
        %v1027 = vld [vmem:[%s3 + $0x38] sm:$0xff]
        %vm1028 = vcmask 523264
        %v1030 = vsel %vm1028, %v988, 0
        %v1033 = vsel %vm1028, %v989, 0
        %v1036 = vsel %vm1028, %v990, 0
        %v1039 = vsel %vm1028, %v991, 0
        %v1042 = vsel %vm1028, %v992, 0
        %v1045 = vsel %vm1028, %v993, 0
        %v1048 = vsel %vm1028, %v994, 0
        %v1051 = vsel %vm1028, %v995, 0
        %v1054 = vsel %vm1028, %v996, 0
        %v1057 = vsel %vm1028, %v997, 0
        %v1060 = vsel %vm1028, %v998, 0
        %v1063 = vsel %vm1028, %v999, 0
        %v1066 = vsel %vm1028, %v1000, 0
        %v1069 = vsel %vm1028, %v1001, 0
        %v1072 = vsel %vm1028, %v1002, 0
        %v1075 = vsel %vm1028, %v1003, 0
        %v1078 = vsel %vm1028, %v1004, 0
        %v1081 = vsel %vm1028, %v1005, 0
        %v1084 = vsel %vm1028, %v1006, 0
        %v1087 = vsel %vm1028, %v1007, 0
        %v1090 = vsel %vm1028, %v1008, 0
        %v1093 = vsel %vm1028, %v1009, 0
        %v1096 = vsel %vm1028, %v1010, 0
        %v1099 = vsel %vm1028, %v1011, 0
        %v1102 = vsel %vm1028, %v1012, 0
        %v1105 = vsel %vm1028, %v1013, 0
        %v1108 = vsel %vm1028, %v1014, 0
        %v1111 = vsel %vm1028, %v1015, 0
        %v1114 = vsel %vm1028, %v1016, 0
        %v1117 = vsel %vm1028, %v1017, 0
        %v1120 = vsel %vm1028, %v1018, 0
        %v1123 = vsel %vm1028, %v1019, 0
        %1125 = vmatprep.subr.mxu0 0.0
        %1126 = vmatpush1.msra.mxu0 %v1020
        %1127 = vmatprep.subr.mxu0 0.0
        %1128 = vmatpush1.msra.mxu0 %v1021
        %1129 = vmatprep.subr.mxu0 0.0
        %1130 = vmatpush1.msra.mxu0 %v1022
        %1131 = vmatprep.subr.mxu0 0.0
        %1132 = vmatpush1.msra.mxu0 %v1023
        %1133 = vmatprep.subr.mxu0 0.0
        %1134 = vmatpush1.msra.mxu0 %v1024
        %1135 = vmatprep.subr.mxu0 0.0
        %1136 = vmatpush1.msra.mxu0 %v1025
        %1137 = vmatprep.subr.mxu0 0.0
        %1138 = vmatpush1.msra.mxu0 %v1026
        %1139 = vmatprep.subr.mxu0 0.0
        %1140 = vmatpush1.msra.mxu0 %v1027
        %1141 = vmatprep.subr.mxu0 0.0
        %1142 = vmatpush1.msra.mxu0 0.0
        %1143 = vmatprep.subr.mxu0 0.0
        %1144 = vmatpush1.msra.mxu0 0.0
        %1145 = vmatprep.subr.mxu0 0.0
        %1146 = vmatpush1.msra.mxu0 0.0
        %1147 = vmatprep.subr.mxu0 0.0
        %1148 = vmatpush1.msra.mxu0 0.0
        %1149 = vmatprep.subr.mxu0 0.0
        %1150 = vmatpush1.msra.mxu0 0.0
        %1151 = vmatprep.subr.mxu0 0.0
        %1152 = vmatpush1.msra.mxu0 0.0
        %1153 = vmatprep.subr.mxu0 0.0
        %1154 = vmatpush1.msra.mxu0 0.0
        %1155 = vmatprep.subr.mxu0 0.0
        %1156 = vmatpush1.msra.mxu0 0.0
        %1157 = vmatprep.subr.mxu0 0.0
        %1158 = vmatpush1.msra.mxu0 0.0
        %1159 = vmatprep.subr.mxu0 0.0
        %1160 = vmatpush1.msra.mxu0 0.0
        %1161 = vmatprep.subr.mxu0 0.0
        %1162 = vmatpush1.msra.mxu0 0.0
        %1163 = vmatprep.subr.mxu0 0.0
        %1164 = vmatpush1.msra.mxu0 0.0
        %1165 = vmatprep.subr.mxu0 0.0
        %1166 = vmatpush1.msra.mxu0 0.0
        %1167 = vmatprep.subr.mxu0 0.0
        %1168 = vmatpush1.msra.mxu0 0.0
        %1169 = vmatprep.subr.mxu0 0.0
        %1170 = vmatpush1.msra.mxu0 0.0
        %1171 = vmatprep.subr.mxu0 0.0
        %1172 = vmatpush1.msra.mxu0 0.0
        %1173 = vmatprep.subr.mxu0 0.0
        %1174 = vmatpush1.msra.mxu0 0.0
        %1175 = vmatprep.subr.mxu0 0.0
        %1176 = vmatpush1.msra.mxu0 0.0
        %1177 = vmatprep.subr.mxu0 0.0
        %1178 = vmatpush1.msra.mxu0 0.0
        %1179 = vmatprep.subr.mxu0 0.0
        %1180 = vmatpush1.msra.mxu0 0.0
        %1181 = vmatprep.subr.mxu0 0.0
        %1182 = vmatpush1.msra.mxu0 0.0
        %1183 = vmatprep.subr.mxu0 0.0
        %1184 = vmatpush1.msra.mxu0 0.0
        %1185 = vmatprep.subr.mxu0 0.0
        %1186 = vmatpush1.msra.mxu0 0.0
        %1187 = vmatprep.subr.mxu0 0.0
        %1188 = vmatpush1.msra.mxu0 0.0
        %1189 = vmatprep.mubr.f32.mxu0 0.0
        %1190 = vmatmul.mubr.f32.gmra.mrb[0].mxu0 %v1030
        %v1191 = vpop.f32.mrb[0].mxu0
        %v1192 = vadd.f32 0.0, %v1191
        %v1193 = vpop.f32.mrb[0].mxu0
        %1194 = vmatprep.mubr.f32.mxu0 0.0
        %1195 = vmatmul.mubr.f32.gmra.mrb[0].mxu0 %v1033
        %v1196 = vpop.f32.mrb[0].mxu0
        %v1197 = vadd.f32 0.0, %v1196
        %v1198 = vpop.f32.mrb[0].mxu0
        %1199 = vmatprep.mubr.f32.mxu0 0.0
        %1200 = vmatmul.mubr.f32.gmra.mrb[0].mxu0 %v1036
        %v1201 = vpop.f32.mrb[0].mxu0
        %v1202 = vadd.f32 0.0, %v1201
        %v1203 = vpop.f32.mrb[0].mxu0
        %1204 = vmatprep.mubr.f32.mxu0 0.0
        %1205 = vmatmul.mubr.f32.gmra.mrb[0].mxu0 %v1039
        %v1206 = vpop.f32.mrb[0].mxu0
        %v1207 = vadd.f32 0.0, %v1206
        %v1208 = vpop.f32.mrb[0].mxu0
        %1209 = vmatprep.mubr.f32.mxu0 0.0
        %1210 = vmatmul.mubr.f32.gmra.mrb[0].mxu0 %v1042
        %v1211 = vpop.f32.mrb[0].mxu0
        %v1212 = vadd.f32 0.0, %v1211
        %v1213 = vpop.f32.mrb[0].mxu0
        %1214 = vmatprep.mubr.f32.mxu0 0.0
        %1215 = vmatmul.mubr.f32.gmra.mrb[0].mxu0 %v1045
        %v1216 = vpop.f32.mrb[0].mxu0
        %v1217 = vadd.f32 0.0, %v1216
        %v1218 = vpop.f32.mrb[0].mxu0
        %1219 = vmatprep.mubr.f32.mxu0 0.0
        %1220 = vmatmul.mubr.f32.gmra.mrb[0].mxu0 %v1048
        %v1221 = vpop.f32.mrb[0].mxu0
        %v1222 = vadd.f32 0.0, %v1221
        %v1223 = vpop.f32.mrb[0].mxu0
        %1224 = vmatprep.mubr.f32.mxu0 0.0
        %1225 = vmatmul.mubr.f32.gmra.mrb[0].mxu0 %v1051
        %v1226 = vpop.f32.mrb[0].mxu0
        %v1227 = vadd.f32 0.0, %v1226
        %v1228 = vpop.f32.mrb[0].mxu0
        %1229 = vmatprep.mubr.f32.mxu0 0.0
        %1230 = vmatmul.mubr.f32.gmra.mrb[0].mxu0 %v1054
        %v1231 = vpop.f32.mrb[0].mxu0
        %v1232 = vadd.f32 0.0, %v1231
        %v1233 = vpop.f32.mrb[0].mxu0
        %1234 = vmatprep.mubr.f32.mxu0 0.0
        %1235 = vmatmul.mubr.f32.gmra.mrb[0].mxu0 %v1057
        %v1236 = vpop.f32.mrb[0].mxu0
        %v1237 = vadd.f32 0.0, %v1236
        %v1238 = vpop.f32.mrb[0].mxu0
        %1239 = vmatprep.mubr.f32.mxu0 0.0
        %1240 = vmatmul.mubr.f32.gmra.mrb[0].mxu0 %v1060
        %v1241 = vpop.f32.mrb[0].mxu0
        %v1242 = vadd.f32 0.0, %v1241
        %v1243 = vpop.f32.mrb[0].mxu0
        %1244 = vmatprep.mubr.f32.mxu0 0.0
        %1245 = vmatmul.mubr.f32.gmra.mrb[0].mxu0 %v1063
        %v1246 = vpop.f32.mrb[0].mxu0
        %v1247 = vadd.f32 0.0, %v1246
        %v1248 = vpop.f32.mrb[0].mxu0
        %1249 = vmatprep.mubr.f32.mxu0 0.0
        %1250 = vmatmul.mubr.f32.gmra.mrb[0].mxu0 %v1066
        %v1251 = vpop.f32.mrb[0].mxu0
        %v1252 = vadd.f32 0.0, %v1251
        %v1253 = vpop.f32.mrb[0].mxu0
        %1254 = vmatprep.mubr.f32.mxu0 0.0
        %1255 = vmatmul.mubr.f32.gmra.mrb[0].mxu0 %v1069
        %v1256 = vpop.f32.mrb[0].mxu0
        %v1257 = vadd.f32 0.0, %v1256
        %v1258 = vpop.f32.mrb[0].mxu0
        %1259 = vmatprep.mubr.f32.mxu0 0.0
        %1260 = vmatmul.mubr.f32.gmra.mrb[0].mxu0 %v1072
        %v1261 = vpop.f32.mrb[0].mxu0
        %v1262 = vadd.f32 0.0, %v1261
        %v1263 = vpop.f32.mrb[0].mxu0
        %1264 = vmatprep.mubr.f32.mxu0 0.0
        %1265 = vmatmul.mubr.f32.gmra.mrb[0].mxu0 %v1075
        %v1266 = vpop.f32.mrb[0].mxu0
        %v1267 = vadd.f32 0.0, %v1266
        %v1268 = vpop.f32.mrb[0].mxu0
        %1269 = vmatprep.mubr.f32.mxu0 0.0
        %1270 = vmatmul.mubr.f32.gmra.mrb[0].mxu0 %v1078
        %v1271 = vpop.f32.mrb[0].mxu0
        %v1272 = vadd.f32 0.0, %v1271
        %v1273 = vpop.f32.mrb[0].mxu0
        %1274 = vmatprep.mubr.f32.mxu0 0.0
        %1275 = vmatmul.mubr.f32.gmra.mrb[0].mxu0 %v1081
        %v1276 = vpop.f32.mrb[0].mxu0
        %v1277 = vadd.f32 0.0, %v1276
        %v1278 = vpop.f32.mrb[0].mxu0
        %1279 = vmatprep.mubr.f32.mxu0 0.0
        %1280 = vmatmul.mubr.f32.gmra.mrb[0].mxu0 %v1084
        %v1281 = vpop.f32.mrb[0].mxu0
        %v1282 = vadd.f32 0.0, %v1281
        %v1283 = vpop.f32.mrb[0].mxu0
        %1284 = vmatprep.mubr.f32.mxu0 0.0
        %1285 = vmatmul.mubr.f32.gmra.mrb[0].mxu0 %v1087
        %v1286 = vpop.f32.mrb[0].mxu0
        %v1287 = vadd.f32 0.0, %v1286
        %v1288 = vpop.f32.mrb[0].mxu0
        %1289 = vmatprep.mubr.f32.mxu0 0.0
        %1290 = vmatmul.mubr.f32.gmra.mrb[0].mxu0 %v1090
        %v1291 = vpop.f32.mrb[0].mxu0
        %v1292 = vadd.f32 0.0, %v1291
        %v1293 = vpop.f32.mrb[0].mxu0
        %1294 = vmatprep.mubr.f32.mxu0 0.0
        %1295 = vmatmul.mubr.f32.gmra.mrb[0].mxu0 %v1093
        %v1296 = vpop.f32.mrb[0].mxu0
        %v1297 = vadd.f32 0.0, %v1296
        %v1298 = vpop.f32.mrb[0].mxu0
        %1299 = vmatprep.mubr.f32.mxu0 0.0
        %1300 = vmatmul.mubr.f32.gmra.mrb[0].mxu0 %v1096
        %v1301 = vpop.f32.mrb[0].mxu0
        %v1302 = vadd.f32 0.0, %v1301
        %v1303 = vpop.f32.mrb[0].mxu0
        %1304 = vmatprep.mubr.f32.mxu0 0.0
        %1305 = vmatmul.mubr.f32.gmra.mrb[0].mxu0 %v1099
        %v1306 = vpop.f32.mrb[0].mxu0
        %v1307 = vadd.f32 0.0, %v1306
        %v1308 = vpop.f32.mrb[0].mxu0
        %1309 = vmatprep.mubr.f32.mxu0 0.0
        %1310 = vmatmul.mubr.f32.gmra.mrb[0].mxu0 %v1102
        %v1311 = vpop.f32.mrb[0].mxu0
        %v1312 = vadd.f32 0.0, %v1311
        %v1313 = vpop.f32.mrb[0].mxu0
        %1314 = vmatprep.mubr.f32.mxu0 0.0
        %1315 = vmatmul.mubr.f32.gmra.mrb[0].mxu0 %v1105
        %v1316 = vpop.f32.mrb[0].mxu0
        %v1317 = vadd.f32 0.0, %v1316
        %v1318 = vpop.f32.mrb[0].mxu0
        %1319 = vmatprep.mubr.f32.mxu0 0.0
        %1320 = vmatmul.mubr.f32.gmra.mrb[0].mxu0 %v1108
        %v1321 = vpop.f32.mrb[0].mxu0
        %v1322 = vadd.f32 0.0, %v1321
        %v1323 = vpop.f32.mrb[0].mxu0
        %1324 = vmatprep.mubr.f32.mxu0 0.0
        %1325 = vmatmul.mubr.f32.gmra.mrb[0].mxu0 %v1111
        %v1326 = vpop.f32.mrb[0].mxu0
        %v1327 = vadd.f32 0.0, %v1326
        %v1328 = vpop.f32.mrb[0].mxu0
        %1329 = vmatprep.mubr.f32.mxu0 0.0
        %1330 = vmatmul.mubr.f32.gmra.mrb[0].mxu0 %v1114
        %v1331 = vpop.f32.mrb[0].mxu0
        %v1332 = vadd.f32 0.0, %v1331
        %v1333 = vpop.f32.mrb[0].mxu0
        %1334 = vmatprep.mubr.f32.mxu0 0.0
        %1335 = vmatmul.mubr.f32.gmra.mrb[0].mxu0 %v1117
        %v1336 = vpop.f32.mrb[0].mxu0
        %v1337 = vadd.f32 0.0, %v1336
        %v1338 = vpop.f32.mrb[0].mxu0
        %1339 = vmatprep.mubr.f32.mxu0 0.0
        %1340 = vmatmul.mubr.f32.gmra.mrb[0].mxu0 %v1120
        %v1341 = vpop.f32.mrb[0].mxu0
        %v1342 = vadd.f32 0.0, %v1341
        %v1343 = vpop.f32.mrb[0].mxu0
        %1344 = vmatprep.mubr.f32.mxu0 0.0
        %1345 = vmatmul.mubr.f32.gmra.mrb[0].mxu0 %v1123
        %v1346 = vpop.f32.mrb[0].mxu0
        %v1347 = vadd.f32 0.0, %v1346
        %v1348 = vpop.f32.mrb[0].mxu0
        %1349 = vdwg.mxu0
        %vm1350 = vcmask 130048
        %v1352 = vsel %vm1350, %v954, 0
        %v1355 = vsel %vm1350, %v955, 0
        %v1358 = vsel %vm1350, %v956, 0
        %v1361 = vsel %vm1350, %v957, 0
        %v1364 = vsel %vm1350, %v958, 0
        %v1367 = vsel %vm1350, %v959, 0
        %v1370 = vsel %vm1350, %v960, 0
        %v1373 = vsel %vm1350, %v961, 0
        %v1376 = vsel %vm1350, %v962, 0
        %v1379 = vsel %vm1350, %v963, 0
        %v1382 = vsel %vm1350, %v964, 0
        %v1385 = vsel %vm1350, %v965, 0
        %v1388 = vsel %vm1350, %v966, 0
        %v1391 = vsel %vm1350, %v967, 0
        %v1394 = vsel %vm1350, %v968, 0
        %v1397 = vsel %vm1350, %v969, 0
        %v1400 = vsel %vm1350, %v970, 0
        %v1403 = vsel %vm1350, %v971, 0
        %v1406 = vsel %vm1350, %v972, 0
        %v1409 = vsel %vm1350, %v973, 0
        %v1412 = vsel %vm1350, %v974, 0
        %v1415 = vsel %vm1350, %v975, 0
        %v1418 = vsel %vm1350, %v976, 0
        %v1421 = vsel %vm1350, %v977, 0
        %v1424 = vsel %vm1350, %v978, 0
        %v1427 = vsel %vm1350, %v979, 0
        %v1430 = vsel %vm1350, %v980, 0
        %v1433 = vsel %vm1350, %v981, 0
        %v1436 = vsel %vm1350, %v982, 0
        %v1439 = vsel %vm1350, %v983, 0
        %v1442 = vsel %vm1350, %v984, 0
        %v1445 = vsel %vm1350, %v985, 0
        %1447 = vmatprep.subr.mxu0 0.0
        %1448 = vmatpush1.msra.mxu0 %v986
        %1449 = vmatprep.subr.mxu0 0.0
        %1450 = vmatpush1.msra.mxu0 %v987
        %1451 = vmatprep.subr.mxu0 0.0
        %1452 = vmatpush1.msra.mxu0 0.0
        %1453 = vmatprep.subr.mxu0 0.0
        %1454 = vmatpush1.msra.mxu0 0.0
        %1455 = vmatprep.subr.mxu0 0.0
        %1456 = vmatpush1.msra.mxu0 0.0
        %1457 = vmatprep.subr.mxu0 0.0
        %1458 = vmatpush1.msra.mxu0 0.0
        %1459 = vmatprep.subr.mxu0 0.0
        %1460 = vmatpush1.msra.mxu0 0.0
        %1461 = vmatprep.subr.mxu0 0.0
        %1462 = vmatpush1.msra.mxu0 0.0
        %1463 = vmatprep.subr.mxu0 0.0
        %1464 = vmatpush1.msra.mxu0 0.0
        %1465 = vmatprep.subr.mxu0 0.0
        %1466 = vmatpush1.msra.mxu0 0.0
        %1467 = vmatprep.subr.mxu0 0.0
        %1468 = vmatpush1.msra.mxu0 0.0
        %1469 = vmatprep.subr.mxu0 0.0
        %1470 = vmatpush1.msra.mxu0 0.0
        %1471 = vmatprep.subr.mxu0 0.0
        %1472 = vmatpush1.msra.mxu0 0.0
        %1473 = vmatprep.subr.mxu0 0.0
        %1474 = vmatpush1.msra.mxu0 0.0
        %1475 = vmatprep.subr.mxu0 0.0
        %1476 = vmatpush1.msra.mxu0 0.0
        %1477 = vmatprep.subr.mxu0 0.0
        %1478 = vmatpush1.msra.mxu0 0.0
        %1479 = vmatprep.subr.mxu0 0.0
        %1480 = vmatpush1.msra.mxu0 0.0
        %1481 = vmatprep.subr.mxu0 0.0
        %1482 = vmatpush1.msra.mxu0 0.0
        %1483 = vmatprep.subr.mxu0 0.0
        %1484 = vmatpush1.msra.mxu0 0.0
        %1485 = vmatprep.subr.mxu0 0.0
        %1486 = vmatpush1.msra.mxu0 0.0
        %1487 = vmatprep.subr.mxu0 0.0
        %1488 = vmatpush1.msra.mxu0 0.0
        %1489 = vmatprep.subr.mxu0 0.0
        %1490 = vmatpush1.msra.mxu0 0.0
        %1491 = vmatprep.subr.mxu0 0.0
        %1492 = vmatpush1.msra.mxu0 0.0
        %1493 = vmatprep.subr.mxu0 0.0
        %1494 = vmatpush1.msra.mxu0 0.0
        %1495 = vmatprep.subr.mxu0 0.0
        %1496 = vmatpush1.msra.mxu0 0.0
        %1497 = vmatprep.subr.mxu0 0.0
        %1498 = vmatpush1.msra.mxu0 0.0
        %1499 = vmatprep.subr.mxu0 0.0
        %1500 = vmatpush1.msra.mxu0 0.0
        %1501 = vmatprep.subr.mxu0 0.0
        %1502 = vmatpush1.msra.mxu0 0.0
        %1503 = vmatprep.subr.mxu0 0.0
        %1504 = vmatpush1.msra.mxu0 0.0
        %1505 = vmatprep.subr.mxu0 0.0
        %1506 = vmatpush1.msra.mxu0 0.0
        %1507 = vmatprep.subr.mxu0 0.0
        %1508 = vmatpush1.msra.mxu0 0.0
        %1509 = vmatprep.subr.mxu0 0.0
        %1510 = vmatpush1.msra.mxu0 0.0
        %1511 = vmatprep.mubr.f32.mxu0 0.0
        %1512 = vmatmul.mubr.f32.gmra.mrb[0].mxu0 %v1352
        %v1513 = vpop.f32.mrb[0].mxu0
        %v1514 = vadd.f32 %v1192, %v1513
        %v1515 = vpop.f32.mrb[0].mxu0
        %1516 = vmatprep.mubr.f32.mxu0 0.0
        %1517 = vmatmul.mubr.f32.gmra.mrb[0].mxu0 %v1355
        %v1518 = vpop.f32.mrb[0].mxu0
        %v1519 = vadd.f32 %v1197, %v1518
        %v1520 = vpop.f32.mrb[0].mxu0
        %1521 = vmatprep.mubr.f32.mxu0 0.0
        %1522 = vmatmul.mubr.f32.gmra.mrb[0].mxu0 %v1358
        %v1523 = vpop.f32.mrb[0].mxu0
        %v1524 = vadd.f32 %v1202, %v1523
        %v1525 = vpop.f32.mrb[0].mxu0
        %1526 = vmatprep.mubr.f32.mxu0 0.0
        %1527 = vmatmul.mubr.f32.gmra.mrb[0].mxu0 %v1361
        %v1528 = vpop.f32.mrb[0].mxu0
        %v1529 = vadd.f32 %v1207, %v1528
        %v1530 = vpop.f32.mrb[0].mxu0
        %1531 = vmatprep.mubr.f32.mxu0 0.0
        %1532 = vmatmul.mubr.f32.gmra.mrb[0].mxu0 %v1364
        %v1533 = vpop.f32.mrb[0].mxu0
        %v1534 = vadd.f32 %v1212, %v1533
        %v1535 = vpop.f32.mrb[0].mxu0
        %1536 = vmatprep.mubr.f32.mxu0 0.0
        %1537 = vmatmul.mubr.f32.gmra.mrb[0].mxu0 %v1367
        %v1538 = vpop.f32.mrb[0].mxu0
        %v1539 = vadd.f32 %v1217, %v1538
        %v1540 = vpop.f32.mrb[0].mxu0
        %1541 = vmatprep.mubr.f32.mxu0 0.0
        %1542 = vmatmul.mubr.f32.gmra.mrb[0].mxu0 %v1370
        %v1543 = vpop.f32.mrb[0].mxu0
        %v1544 = vadd.f32 %v1222, %v1543
        %v1545 = vpop.f32.mrb[0].mxu0
        %1546 = vmatprep.mubr.f32.mxu0 0.0
        %1547 = vmatmul.mubr.f32.gmra.mrb[0].mxu0 %v1373
        %v1548 = vpop.f32.mrb[0].mxu0
        %v1549 = vadd.f32 %v1227, %v1548
        %v1550 = vpop.f32.mrb[0].mxu0
        %1551 = vmatprep.mubr.f32.mxu0 0.0
        %1552 = vmatmul.mubr.f32.gmra.mrb[0].mxu0 %v1376
        %v1553 = vpop.f32.mrb[0].mxu0
        %v1554 = vadd.f32 %v1232, %v1553
        %v1555 = vpop.f32.mrb[0].mxu0
        %1556 = vmatprep.mubr.f32.mxu0 0.0
        %1557 = vmatmul.mubr.f32.gmra.mrb[0].mxu0 %v1379
        %v1558 = vpop.f32.mrb[0].mxu0
        %v1559 = vadd.f32 %v1237, %v1558
        %v1560 = vpop.f32.mrb[0].mxu0
        %1561 = vmatprep.mubr.f32.mxu0 0.0
        %1562 = vmatmul.mubr.f32.gmra.mrb[0].mxu0 %v1382
        %v1563 = vpop.f32.mrb[0].mxu0
        %v1564 = vadd.f32 %v1242, %v1563
        %v1565 = vpop.f32.mrb[0].mxu0
        %1566 = vmatprep.mubr.f32.mxu0 0.0
        %1567 = vmatmul.mubr.f32.gmra.mrb[0].mxu0 %v1385
        %v1568 = vpop.f32.mrb[0].mxu0
        %v1569 = vadd.f32 %v1247, %v1568
        %v1570 = vpop.f32.mrb[0].mxu0
        %1571 = vmatprep.mubr.f32.mxu0 0.0
        %1572 = vmatmul.mubr.f32.gmra.mrb[0].mxu0 %v1388
        %v1573 = vpop.f32.mrb[0].mxu0
        %v1574 = vadd.f32 %v1252, %v1573
        %v1575 = vpop.f32.mrb[0].mxu0
        %1576 = vmatprep.mubr.f32.mxu0 0.0
        %1577 = vmatmul.mubr.f32.gmra.mrb[0].mxu0 %v1391
        %v1578 = vpop.f32.mrb[0].mxu0
        %v1579 = vadd.f32 %v1257, %v1578
        %v1580 = vpop.f32.mrb[0].mxu0
        %1581 = vmatprep.mubr.f32.mxu0 0.0
        %1582 = vmatmul.mubr.f32.gmra.mrb[0].mxu0 %v1394
        %v1583 = vpop.f32.mrb[0].mxu0
        %v1584 = vadd.f32 %v1262, %v1583
        %v1585 = vpop.f32.mrb[0].mxu0
        %1586 = vmatprep.mubr.f32.mxu0 0.0
        %1587 = vmatmul.mubr.f32.gmra.mrb[0].mxu0 %v1397
        %v1588 = vpop.f32.mrb[0].mxu0
        %v1589 = vadd.f32 %v1267, %v1588
        %v1590 = vpop.f32.mrb[0].mxu0
        %1591 = vmatprep.mubr.f32.mxu0 0.0
        %1592 = vmatmul.mubr.f32.gmra.mrb[0].mxu0 %v1400
        %v1593 = vpop.f32.mrb[0].mxu0
        %v1594 = vadd.f32 %v1272, %v1593
        %v1595 = vpop.f32.mrb[0].mxu0
        %1596 = vmatprep.mubr.f32.mxu0 0.0
        %1597 = vmatmul.mubr.f32.gmra.mrb[0].mxu0 %v1403
        %v1598 = vpop.f32.mrb[0].mxu0
        %v1599 = vadd.f32 %v1277, %v1598
        %v1600 = vpop.f32.mrb[0].mxu0
        %1601 = vmatprep.mubr.f32.mxu0 0.0
        %1602 = vmatmul.mubr.f32.gmra.mrb[0].mxu0 %v1406
        %v1603 = vpop.f32.mrb[0].mxu0
        %v1604 = vadd.f32 %v1282, %v1603
        %v1605 = vpop.f32.mrb[0].mxu0
        %1606 = vmatprep.mubr.f32.mxu0 0.0
        %1607 = vmatmul.mubr.f32.gmra.mrb[0].mxu0 %v1409
        %v1608 = vpop.f32.mrb[0].mxu0
        %v1609 = vadd.f32 %v1287, %v1608
        %v1610 = vpop.f32.mrb[0].mxu0
        %1611 = vmatprep.mubr.f32.mxu0 0.0
        %1612 = vmatmul.mubr.f32.gmra.mrb[0].mxu0 %v1412
        %v1613 = vpop.f32.mrb[0].mxu0
        %v1614 = vadd.f32 %v1292, %v1613
        %v1615 = vpop.f32.mrb[0].mxu0
        %1616 = vmatprep.mubr.f32.mxu0 0.0
        %1617 = vmatmul.mubr.f32.gmra.mrb[0].mxu0 %v1415
        %v1618 = vpop.f32.mrb[0].mxu0
        %v1619 = vadd.f32 %v1297, %v1618
        %v1620 = vpop.f32.mrb[0].mxu0
        %1621 = vmatprep.mubr.f32.mxu0 0.0
        %1622 = vmatmul.mubr.f32.gmra.mrb[0].mxu0 %v1418
        %v1623 = vpop.f32.mrb[0].mxu0
        %v1624 = vadd.f32 %v1302, %v1623
        %v1625 = vpop.f32.mrb[0].mxu0
        %1626 = vmatprep.mubr.f32.mxu0 0.0
        %1627 = vmatmul.mubr.f32.gmra.mrb[0].mxu0 %v1421
        %v1628 = vpop.f32.mrb[0].mxu0
        %v1629 = vadd.f32 %v1307, %v1628
        %v1630 = vpop.f32.mrb[0].mxu0
        %1631 = vmatprep.mubr.f32.mxu0 0.0
        %1632 = vmatmul.mubr.f32.gmra.mrb[0].mxu0 %v1424
        %v1633 = vpop.f32.mrb[0].mxu0
        %v1634 = vadd.f32 %v1312, %v1633
        %v1635 = vpop.f32.mrb[0].mxu0
        %1636 = vmatprep.mubr.f32.mxu0 0.0
        %1637 = vmatmul.mubr.f32.gmra.mrb[0].mxu0 %v1427
        %v1638 = vpop.f32.mrb[0].mxu0
        %v1639 = vadd.f32 %v1317, %v1638
        %v1640 = vpop.f32.mrb[0].mxu0
        %1641 = vmatprep.mubr.f32.mxu0 0.0
        %1642 = vmatmul.mubr.f32.gmra.mrb[0].mxu0 %v1430
        %v1643 = vpop.f32.mrb[0].mxu0
        %v1644 = vadd.f32 %v1322, %v1643
        %v1645 = vpop.f32.mrb[0].mxu0
        %1646 = vmatprep.mubr.f32.mxu0 0.0
        %1647 = vmatmul.mubr.f32.gmra.mrb[0].mxu0 %v1433
        %v1648 = vpop.f32.mrb[0].mxu0
        %v1649 = vadd.f32 %v1327, %v1648
        %v1650 = vpop.f32.mrb[0].mxu0
        %1651 = vmatprep.mubr.f32.mxu0 0.0
        %1652 = vmatmul.mubr.f32.gmra.mrb[0].mxu0 %v1436
        %v1653 = vpop.f32.mrb[0].mxu0
        %v1654 = vadd.f32 %v1332, %v1653
        %v1655 = vpop.f32.mrb[0].mxu0
        %1656 = vmatprep.mubr.f32.mxu0 0.0
        %1657 = vmatmul.mubr.f32.gmra.mrb[0].mxu0 %v1439
        %v1658 = vpop.f32.mrb[0].mxu0
        %v1659 = vadd.f32 %v1337, %v1658
        %v1660 = vpop.f32.mrb[0].mxu0
        %1661 = vmatprep.mubr.f32.mxu0 0.0
        %1662 = vmatmul.mubr.f32.gmra.mrb[0].mxu0 %v1442
        %v1663 = vpop.f32.mrb[0].mxu0
        %v1664 = vadd.f32 %v1342, %v1663
        %v1665 = vpop.f32.mrb[0].mxu0
        %1666 = vmatprep.mubr.f32.mxu0 0.0
        %1667 = vmatmul.mubr.f32.gmra.mrb[0].mxu0 %v1445
        %v1668 = vpop.f32.mrb[0].mxu0
        %v1669 = vadd.f32 %v1347, %v1668
        %v1670 = vpop.f32.mrb[0].mxu0
        %1671 = vdwg.mxu0
        %v1672 = vld [vmem:[%s4] sm:$0x1]
        %v1674 = vlaneseq
        %v1675 = vshrl.u32 %v1674, 7
        %v1676 = vsub.s32 0, %v1675
        %v1677 = vrot.slane %v1672, %v1676
        %v1679 = vadd.f32 %v1514, %v1677
        %v1680 = vadd.f32 %v1519, %v1677
        %v1681 = vadd.f32 %v1524, %v1677
        %v1682 = vadd.f32 %v1529, %v1677
        %v1683 = vadd.f32 %v1534, %v1677
        %v1684 = vadd.f32 %v1539, %v1677
        %v1685 = vadd.f32 %v1544, %v1677
        %v1686 = vadd.f32 %v1549, %v1677
        %v1687 = vadd.f32 %v1554, %v1677
        %v1688 = vadd.f32 %v1559, %v1677
        %v1689 = vadd.f32 %v1564, %v1677
        %v1690 = vadd.f32 %v1569, %v1677
        %v1691 = vadd.f32 %v1574, %v1677
        %v1692 = vadd.f32 %v1579, %v1677
        %v1693 = vadd.f32 %v1584, %v1677
        %v1694 = vadd.f32 %v1589, %v1677
        %v1695 = vadd.f32 %v1594, %v1677
        %v1696 = vadd.f32 %v1599, %v1677
        %v1697 = vadd.f32 %v1604, %v1677
        %v1698 = vadd.f32 %v1609, %v1677
        %v1699 = vadd.f32 %v1614, %v1677
        %v1700 = vadd.f32 %v1619, %v1677
        %v1701 = vadd.f32 %v1624, %v1677
        %v1702 = vadd.f32 %v1629, %v1677
        %v1703 = vadd.f32 %v1634, %v1677
        %v1704 = vadd.f32 %v1639, %v1677
        %v1705 = vadd.f32 %v1644, %v1677
        %v1706 = vadd.f32 %v1649, %v1677
        %v1707 = vadd.f32 %v1654, %v1677
        %v1708 = vadd.f32 %v1659, %v1677
        %v1709 = vadd.f32 %v1664, %v1677
        %v1710 = vadd.f32 %v1669, %v1677
        %v1711 = vpack.c.bf16 %v1680, %v1679
        %v1712 = vpack.c.bf16 %v1682, %v1681
        %v1713 = vpack.c.bf16 %v1684, %v1683
        %v1714 = vpack.c.bf16 %v1686, %v1685
        %v1715 = vpack.c.bf16 %v1688, %v1687
        %v1716 = vpack.c.bf16 %v1690, %v1689
        %v1717 = vpack.c.bf16 %v1692, %v1691
        %v1718 = vpack.c.bf16 %v1694, %v1693
        %v1719 = vpack.c.bf16 %v1696, %v1695
        %v1720 = vpack.c.bf16 %v1698, %v1697
        %v1721 = vpack.c.bf16 %v1700, %v1699
        %v1722 = vpack.c.bf16 %v1702, %v1701
        %v1723 = vpack.c.bf16 %v1704, %v1703
        %v1724 = vpack.c.bf16 %v1706, %v1705
        %v1725 = vpack.c.bf16 %v1708, %v1707
        %v1726 = vpack.c.bf16 %v1710, %v1709
        %v1743 = vunpack.c.l.b16 %v1711
        %v1744 = vunpack.c.h.b16 %v1711
        %v1745 = vunpack.c.l.b16 %v1712
        %v1746 = vunpack.c.h.b16 %v1712
        %v1747 = vunpack.c.l.b16 %v1713
        %v1748 = vunpack.c.h.b16 %v1713
        %v1749 = vunpack.c.l.b16 %v1714
        %v1750 = vunpack.c.h.b16 %v1714
        %v1751 = vunpack.c.l.b16 %v1715
        %v1752 = vunpack.c.h.b16 %v1715
        %v1753 = vunpack.c.l.b16 %v1716
        %v1754 = vunpack.c.h.b16 %v1716
        %v1755 = vunpack.c.l.b16 %v1717
        %v1756 = vunpack.c.h.b16 %v1717
        %v1757 = vunpack.c.l.b16 %v1718
        %v1758 = vunpack.c.h.b16 %v1718
        %v1759 = vunpack.c.l.b16 %v1719
        %v1760 = vunpack.c.h.b16 %v1719
        %v1761 = vunpack.c.l.b16 %v1720
        %v1762 = vunpack.c.h.b16 %v1720
        %v1763 = vunpack.c.l.b16 %v1721
        %v1764 = vunpack.c.h.b16 %v1721
        %v1765 = vunpack.c.l.b16 %v1722
        %v1766 = vunpack.c.h.b16 %v1722
        %v1767 = vunpack.c.l.b16 %v1723
        %v1768 = vunpack.c.h.b16 %v1723
        %v1769 = vunpack.c.l.b16 %v1724
        %v1770 = vunpack.c.h.b16 %v1724
        %v1771 = vunpack.c.l.b16 %v1725
        %v1772 = vunpack.c.h.b16 %v1725
        %v1773 = vunpack.c.l.b16 %v1726
        %v1774 = vunpack.c.h.b16 %v1726
        %v1775 = vpack.c.b16 %v1743, %v1743
        %v1776 = vpack.c.b16 %v1744, %v1744
        %v1777 = vpack.c.b16 %v1745, %v1745
        %v1778 = vpack.c.b16 %v1746, %v1746
        %v1779 = vpack.c.b16 %v1747, %v1747
        %v1780 = vpack.c.b16 %v1748, %v1748
        %v1781 = vpack.c.b16 %v1749, %v1749
        %v1782 = vpack.c.b16 %v1750, %v1750
        %v1783 = vpack.c.b16 %v1751, %v1751
        %v1784 = vpack.c.b16 %v1752, %v1752
        %v1785 = vpack.c.b16 %v1753, %v1753
        %v1786 = vpack.c.b16 %v1754, %v1754
        %v1787 = vpack.c.b16 %v1755, %v1755
        %v1788 = vpack.c.b16 %v1756, %v1756
        %v1789 = vpack.c.b16 %v1757, %v1757
        %v1790 = vpack.c.b16 %v1758, %v1758
        %v1791 = vpack.c.b16 %v1759, %v1759
        %v1792 = vpack.c.b16 %v1760, %v1760
        %v1793 = vpack.c.b16 %v1761, %v1761
        %v1794 = vpack.c.b16 %v1762, %v1762
        %v1795 = vpack.c.b16 %v1763, %v1763
        %v1796 = vpack.c.b16 %v1764, %v1764
        %v1797 = vpack.c.b16 %v1765, %v1765
        %v1798 = vpack.c.b16 %v1766, %v1766
        %v1799 = vpack.c.b16 %v1767, %v1767
        %v1800 = vpack.c.b16 %v1768, %v1768
        %v1801 = vpack.c.b16 %v1769, %v1769
        %v1802 = vpack.c.b16 %v1770, %v1770
        %v1803 = vpack.c.b16 %v1771, %v1771
        %v1804 = vpack.c.b16 %v1772, %v1772
        %v1805 = vpack.c.b16 %v1773, %v1773
        %v1806 = vpack.c.b16 %v1774, %v1774
        %1839 = vst [vmem:[%s234] sm:$0xf] %v1775
        %1840 = vst [vmem:[%s234 + $0x4] sm:$0xf] %v1776
        %1841 = vst [vmem:[%s234 + $0x8] sm:$0xf] %v1777
        %1842 = vst [vmem:[%s234 + $0xc] sm:$0xf] %v1778
        %1843 = vst [vmem:[%s234 + $0x10] sm:$0xf] %v1779
        %1844 = vst [vmem:[%s234 + $0x14] sm:$0xf] %v1780
        %1845 = vst [vmem:[%s234 + $0x18] sm:$0xf] %v1781
        %1846 = vst [vmem:[%s234 + $0x1c] sm:$0xf] %v1782
        %1847 = vst [vmem:[%s234 + $0x20] sm:$0xf] %v1783
        %1848 = vst [vmem:[%s234 + $0x24] sm:$0xf] %v1784
        %1849 = vst [vmem:[%s234 + $0x28] sm:$0xf] %v1785
        %1850 = vst [vmem:[%s234 + $0x2c] sm:$0xf] %v1786
        %1851 = vst [vmem:[%s234 + $0x30] sm:$0xf] %v1787
        %1852 = vst [vmem:[%s234 + $0x34] sm:$0xf] %v1788
        %1853 = vst [vmem:[%s234 + $0x38] sm:$0xf] %v1789
        %1854 = vst [vmem:[%s234 + $0x3c] sm:$0xf] %v1790
        %1855 = vst [vmem:[%s234 + $0x40] sm:$0xf] %v1791
        %1856 = vst [vmem:[%s234 + $0x44] sm:$0xf] %v1792
        %1857 = vst [vmem:[%s234 + $0x48] sm:$0xf] %v1793
        %1858 = vst [vmem:[%s234 + $0x4c] sm:$0xf] %v1794
        %1859 = vst [vmem:[%s234 + $0x50] sm:$0xf] %v1795
        %1860 = vst [vmem:[%s234 + $0x54] sm:$0xf] %v1796
        %1861 = vst [vmem:[%s234 + $0x58] sm:$0xf] %v1797
        %1862 = vst [vmem:[%s234 + $0x5c] sm:$0xf] %v1798
        %1863 = vst [vmem:[%s234 + $0x60] sm:$0xf] %v1799
        %1864 = vst [vmem:[%s234 + $0x64] sm:$0xf] %v1800
        %1865 = vst [vmem:[%s234 + $0x68] sm:$0xf] %v1801
        %1866 = vst [vmem:[%s234 + $0x6c] sm:$0xf] %v1802
        %1867 = vst [vmem:[%s234 + $0x70] sm:$0xf] %v1803
        %1868 = vst [vmem:[%s234 + $0x74] sm:$0xf] %v1804
        %1869 = vst [vmem:[%s234 + $0x78] sm:$0xf] %v1805
        %1870 = vst [vmem:[%s234 + $0x7c] sm:$0xf] %v1806
        %s1871 = sand.u32 %s142, 1
        %s1872 = scalar_lea.sflag [#allocation3], %s1871
        %s1873 = sand.u32 %s142, 1
        %s1874 = smul.addr %s1873, 128
        %s1875 = scalar_lea.vmem [#allocation2], %s1874
        // Predicated region
        $region41: #{tpu_custom_call.1} parent=39 // pred_check
          %p1876 = pneg %p152
        $region42: #{tpu_custom_call.1} parent=39 // pred_check_branch
          %1878 = sbr.rel (%p1876) target = $region44
        $region43: #{tpu_custom_call.1} parent=39 // pred_region
          %s1879 = smul.u32 32, %s19
          %s1881 = ssub.s32 2048, 2048
          %1882 = vsyncadd %s1872, %s1881
          %s1883 = smul.addr %s1879, 64
          %s1884 = scalar_lea.hbm %s5, %s1883
          %s1885 = sshll.u32 %s1875, 4
          %s1886 = int_to_ptr.vmem [resolvable:$true] %s1885
          %1891 = dma.vmem_to_hbm [thread:$0]  %s1886, 2048, %s1884, %s1872, 64, 64, 4
        $region44: #{tpu_custom_call.1} parent=39 // pred_fallthru
          _
      $region40: #{tpu_custom_call.1} parent=5 // pred_fallthru
        _
      %p1892 = scmp.le.s32.totalorder 2, %s14
      // Predicated region
      $region45: #{tpu_custom_call.1} parent=5 // pred_check
        %p1893 = pneg %p1892
      $region46: #{tpu_custom_call.1} parent=5 // pred_check_branch
        %1895 = sbr.rel (%p1893) target = $region48
      $region47: #{tpu_custom_call.1} parent=5 // pred_region
        %s1896 = ssub.s32 %s14, 2
        // Predicated region
        $region49: #{tpu_custom_call.1} parent=47 // pred_check
          %p1897 = pneg %p158
        $region50: #{tpu_custom_call.1} parent=47 // pred_check_branch
          %1899 = sbr.rel (%p1897) target = $region52
        $region51: #{tpu_custom_call.1} parent=47 // pred_region
          %s1900 = sand.u32 %s143, 1
          %s1901 = scalar_lea.sflag [#allocation3], %s1900
          %s1902 = sand.u32 %s143, 1
          %s1903 = smul.addr %s1902, 128
          %s1904 = scalar_lea.vmem [#allocation2], %s1903
          %1905 = dma.done %s1901, 2048
        $region52: #{tpu_custom_call.1} parent=47 // pred_fallthru
          _
      $region48: #{tpu_custom_call.1} parent=5 // pred_fallthru
        _
    $region6: #{tpu_custom_call.1} parent=1 // loop_footer
      %s18 = sadd.s32 1, %s14
    $region7: #{tpu_custom_call.1} parent=1 // loop_footer_branch
      %13 = sbr.rel target = $region3
    $region8: #{tpu_custom_call.1} parent=1 // loop_exit
      _
    %1906 = vsyncpa [#allocation3], 1
    %s1907 = scalar_lea.sflag [#allocation3], 1
    %1908 = vsyncpa %s1907, 1

</llo_original>
